<compile_context>
chip_gen: v5e
topology: v5e:2x2
jax: 0.10.0
libtpu: 0.0.40
codegen_flags: <defaults>
</compile_context>

<pallas_src>
import functools

import jax
import jax.numpy as jnp
from jax import lax
from jax.experimental import pallas as pl
from jax.experimental.pallas import tpu as pltpu


# ----------------------------- Pallas kernel --------------------------------

def _gemm_bias_act_kernel(w_ref, a_ref, bias_ref, o_ref, *, act):
    # (R, K) @ (K, tm) on the MXU, f32 accumulation.  R = 4*C_out phase rows.
    acc = jnp.dot(w_ref[...], a_ref[...], preferred_element_type=jnp.float32)
    # BN scale is pre-folded into w_ref rows; only the bias remains here.
    acc = acc + bias_ref[...]
    if act == "leaky":
        acc = jnp.where(acc >= 0, acc, 0.2 * acc)     # f32 VPU epilogue
    elif act == "tanh":
        acc = jnp.tanh(acc)                           # EUP
    o_ref[...] = acc.astype(o_ref.dtype)


# --------------------------- tiling / device info ----------------------------

_LANE = 128
_A_TILE_VMEM_BUDGET = 8 << 20        # per A buffer (x2 for double buffering)


def _num_tensorcores_per_device():
    """Multi-TC (megacore) detection: v4 / v5p / v7x expose 2 TCs per device."""
    try:
        kind = str(jax.devices()[0].device_kind).lower()
    except Exception:
        return 1
    return 2 if any(tag in kind for tag in ("v7", "v5p", "v4")) else 1


_NUM_TC = _num_tensorcores_per_device()


def _pick_tile_m(m, bytes_per_col, num_tc):
    """Lane-tile size for the GEMM M (= N*H*W) axis.

    Single-TC chips (v5e/v6e): one full-M tile -- splitting buys no parallelism
    and only adds ~0.35us/step pipeline overhead plus an extra writeback split.
    Multi-TC chips (v7x): split into >=2 lane-aligned tiles so the 'parallel'
    grid axis feeds both TensorCores.  A VMEM guard bounds the A tile at large
    batch while keeping tiles as multiples of 128 lanes that divide M exactly
    (no wrapper-side padding, no masked lane stores).
    """
    tm = m
    if num_tc >= 2 and m >= 4 * _LANE and m % (2 * _LANE) == 0:
        tm = m // 2
    while tm * bytes_per_col > _A_TILE_VMEM_BUDGET and tm % (2 * _LANE) == 0:
        tm //= 2
    return tm


def pallas_gemm_bias_act(w_mat, a_t, bias, act, out_dtype):
    """out (R, M) = act((w_mat @ a_t) + bias), lane-dense on M."""
    r, k = w_mat.shape
    k2, m = a_t.shape
    assert k == k2 and bias.shape == (r, 1)
    tm = _pick_tile_m(m, k * a_t.dtype.itemsize, _NUM_TC)
    assert m % tm == 0
    flops = 2 * r * k * m
    transcendentals = r * m if act == "tanh" else 0
    bytes_accessed = (w_mat.size * w_mat.dtype.itemsize
                      + a_t.size * a_t.dtype.itemsize
                      + bias.size * bias.dtype.itemsize
                      + r * m * jnp.dtype(out_dtype).itemsize)
    return pl.pallas_call(
        functools.partial(_gemm_bias_act_kernel, act=act),
        out_shape=jax.ShapeDtypeStruct((r, m), out_dtype),
        grid=(m // tm,),
        in_specs=[
            pl.BlockSpec((r, k), lambda i: (0, 0)),    # phase weights (resident)
            pl.BlockSpec((k, tm), lambda i: (0, i)),   # shared 3x3 patch columns
            pl.BlockSpec((r, 1), lambda i: (0, 0)),    # folded BN bias
        ],
        out_specs=pl.BlockSpec((r, tm), lambda i: (0, i)),
        compiler_params=pltpu.CompilerParams(
            dimension_semantics=("parallel",)),
        cost_estimate=pl.CostEstimate(flops=flops,
                                      transcendentals=transcendentals,
                                      bytes_accessed=bytes_accessed),
    )(w_mat, a_t, bias)


# ----------------------- parameter preparation (once) ------------------------

def _fold_bn(bn, c_out):
    """Eval-mode BatchNorm -> per-channel (scale, bias)."""
    if bn is None:
        return jnp.ones((c_out,), jnp.float32), jnp.zeros((c_out,), jnp.float32)
    gamma, beta, mean, var = bn
    scale = gamma * lax.rsqrt(var + 1e-5)
    return scale.astype(jnp.float32), (beta - mean * scale).astype(jnp.float32)


def _phase_weight_matrix(w_t):
    """ConvTranspose2d(k=4, s=2, p=1) weight -> phase-decomposed GEMM matrix.

    Returns (4*C_out, C_in*9): row = (py*2+px)*C_out + co, col = ci*9 + s*3 + t.
    Each row block is one of the four 2x2 phase sub-kernels, embedded in the
    shared 3x3 patch basis of the 1-padded input (structural zeros elsewhere).
    Derivation (oy = 2*qy + py, padded-patch offset s covers input row qy+s-1):
      py=0: s=0 -> ky=3, s=1 -> ky=1 ;  py=1: s=1 -> ky=2, s=2 -> ky=0.
    """
    c_in, c_out, kh, kw = w_t.shape
    assert kh == 4 and kw == 4
    taps = {(0, 0): 3, (0, 1): 1, (1, 1): 2, (1, 2): 0}   # (phase, offset) -> k
    full = jnp.zeros((2, 2, c_out, c_in, 3, 3), jnp.float32)
    for (py, s), ky in taps.items():
        for (px, t), kx in taps.items():
            full = full.at[py, px, :, :, s, t].set(w_t[:, :, ky, kx].T)
    return full.reshape(4 * c_out, c_in * 9)


def _prep_deconv(w_t, bn):
    """Stride-2 layer: fold BN scale into the bf16 phase-weight matrix."""
    c_out = w_t.shape[1]
    scale, bias = _fold_bn(bn, c_out)
    w_mat = _phase_weight_matrix(w_t) * jnp.tile(scale, 4)[:, None]
    return (w_mat.astype(jnp.bfloat16),
            jnp.tile(bias, 4).reshape(4 * c_out, 1).astype(jnp.float32))


def _prep_first(w_t, bn):
    """Layer 1 (1x1 -> 4x4 deconv) == plain GEMM; fold BN scale into rows."""
    c_in, c_out = w_t.shape[0], w_t.shape[1]
    scale, bias = _fold_bn(bn, c_out)
    w_mat = jnp.transpose(w_t, (1, 2, 3, 0)).reshape(c_out * 16, c_in)
    w_mat = w_mat * jnp.repeat(scale, 16)[:, None]
    return w_mat.astype(jnp.float32), bias.astype(jnp.float32)


def prepare_generator_params(params):
    """Done ONCE (outside the forward) so the BN/weight folding is never
    re-executed per call (avoids the 'pre-scale in wrapper' anti-pattern)."""
    (w1, bn1), (w2, bn2), (w3, bn3), (w4, bn4), (w5,) = params
    return {
        "l1": _prep_first(w1, bn1),
        "l2": _prep_deconv(w2, bn2),
        "l3": _prep_deconv(w3, bn3),
        "l4": _prep_deconv(w4, bn4),
        "l5": _prep_deconv(w5, None),
    }


# ------------------------------ forward pass ---------------------------------

def deconv_stride2_layer(x_cnhw, w_mat, bias, *, act, out_dtype):
    """ConvTranspose2d(4, stride=2, padding=1, bias=False) + folded BN + act.

    Input/output activations are channel-first (C, N, H, W).  One fused Pallas
    GEMM per layer; the pixel-shuffle back to image layout is cheap XLA glue.
    """
    c_in, n, h, w = x_cnhw.shape
    r = w_mat.shape[0]
    c_out = r // 4
    assert w_mat.shape[1] == c_in * 9
    # Shared 3x3 patch basis of the 1-padded, un-dilated input.
    p = jnp.pad(x_cnhw, ((0, 0), (0, 0), (1, 1), (1, 1)))
    # TODO(synk): this im2col still materializes A_T (9*C_in*M) in HBM; an
    #             in-kernel gather would remove it (review item #2).
    cols = [p[:, :, s:s + h, t:t + w] for s in range(3) for t in range(3)]
    a_t = jnp.stack(cols, axis=1).reshape(c_in * 9, n * h * w)
    out = pallas_gemm_bias_act(w_mat, a_t, bias, act, out_dtype)   # (4*C_out, M)
    # Pixel-shuffle the 4 phases back: out[co, n, 2qy+py, 2qx+px].
    y = out.reshape(2, 2, c_out, n, h, w)                 # (py, px, co, n, qy, qx)
    y = jnp.transpose(y, (2, 3, 4, 0, 5, 1))              # (co, n, qy, py, qx, px)
    return y.reshape(c_out, n, 2 * h, 2 * w)


def generator_forward(z, prep):
    """z: (N, input_size). Returns (N, output_channels, 64, 64)."""
    n = z.shape[0]
    # --- layer 1: ConvTranspose2d(k=4, s=1, p=0) on a 1x1 input == GEMM -------
    # Plain jnp.dot per the perf review (a pallas_call launch + 2-lane masked
    # stores would dominate this 32K-MAC layer).
    w1_mat, b1 = prep["l1"]
    c_out1 = b1.shape[0]
    y = jnp.dot(w1_mat, z.astype(jnp.float32).T,
                precision=lax.Precision.HIGHEST)          # (16*C_out, N)
    y = jnp.transpose(y.reshape(c_out1, 4, 4, n), (0, 3, 1, 2))
    y = y + b1[:, None, None, None]
    y = jnp.where(y >= 0, y, 0.2 * y)
    x = y.astype(jnp.bfloat16)                            # channel-first (C, N, 4, 4)
    # --- layers 2-5: phase-decomposed stride-2 deconvs (fused Pallas GEMMs) ---
    x = deconv_stride2_layer(x, *prep["l2"], act="leaky", out_dtype=jnp.bfloat16)
    x = deconv_stride2_layer(x, *prep["l3"], act="leaky", out_dtype=jnp.bfloat16)
    x = deconv_stride2_layer(x, *prep["l4"], act="leaky", out_dtype=jnp.bfloat16)
    x = deconv_stride2_layer(x, *prep["l5"], act="tanh", out_dtype=jnp.float32)
    return jnp.transpose(x, (1, 0, 2, 3))                 # back to NCHW once


# --------------------------- reference (plain JAX) ---------------------------

def _ref_forward(z, params):
    def conv_t(x, w_t, stride, padding):
        k = w_t.shape[2]
        w_conv = jnp.transpose(jnp.flip(w_t, axis=(2, 3)), (1, 0, 2, 3))
        return lax.conv_general_dilated(
            x, w_conv, window_strides=(1, 1),
            padding=[(k - 1 - padding,) * 2] * 2,
            lhs_dilation=(stride, stride),
            dimension_numbers=("NCHW", "OIHW", "NCHW"),
            precision=lax.Precision.HIGHEST)

    def bn(x, p):
        gamma, beta, mean, var = p
        s = gamma / jnp.sqrt(var + 1e-5)
        return x * s[None, :, None, None] + (beta - mean * s)[None, :, None, None]

    def lrelu(v):
        return jnp.where(v >= 0, v, 0.2 * v)

    (w1, b1), (w2, b2), (w3, b3), (w4, b4), (w5,) = params
    x = z.reshape(z.shape[0], z.shape[1], 1, 1)
    x = lrelu(bn(conv_t(x, w1, 1, 0), b1))
    x = lrelu(bn(conv_t(x, w2, 2, 1), b2))
    x = lrelu(bn(conv_t(x, w3, 2, 1), b3))
    x = lrelu(bn(conv_t(x, w4, 2, 1), b4))
    return jnp.tanh(conv_t(x, w5, 2, 1))


# --------------------------------- main --------------------------------------

if __name__ == "__main__":
    # Small config consistent with the module (image_size[1] == 64 branch):
    # latent input_size=16, output_channels=3, nf=8, batch=2.
    # Spatial path: 1 -> 4 -> 8 -> 16 -> 32 -> 64.
    batch, input_size, output_channels, nf = 2, 16, 3, 8

    key = jax.random.PRNGKey(0)
    kz, kw, kb = jax.random.split(key, 3)
    kw1, kw2, kw3, kw4, kw5 = jax.random.split(kw, 5)
    kb1, kb2, kb3, kb4 = jax.random.split(kb, 4)

    def w_init(k, c_in, c_out):          # normal_init(mean=0, std=0.02), bias=False
        return (0.02 * jax.random.normal(k, (c_in, c_out, 4, 4))).astype(jnp.float32)

    def bn_init(k, c):                   # non-trivial eval-mode BN params
        kg, kbt, km, kv = jax.random.split(k, 4)
        gamma = 1.0 + 0.1 * jax.random.normal(kg, (c,))
        beta = 0.1 * jax.random.normal(kbt, (c,))
        mean = 0.1 * jax.random.normal(km, (c,))
        var = 0.05 + 0.1 * jax.random.uniform(kv, (c,))
        return (gamma.astype(jnp.float32), beta.astype(jnp.float32),
                mean.astype(jnp.float32), var.astype(jnp.float32))

    params = (
        (w_init(kw1, input_size, nf * 8), bn_init(kb1, nf * 8)),
        (w_init(kw2, nf * 8, nf * 4),     bn_init(kb2, nf * 4)),
        (w_init(kw3, nf * 4, nf * 2),     bn_init(kb3, nf * 2)),
        (w_init(kw4, nf * 2, nf),         bn_init(kb4, nf)),
        (w_init(kw5, nf, output_channels),),
    )

    z = jax.random.normal(kz, (batch, input_size), dtype=jnp.float32)

    prep = prepare_generator_params(params)              # once, outside forward
    fwd = jax.jit(generator_forward)

    out = jax.block_until_ready(fwd(z, prep))
    assert out.shape == (batch, output_channels, 64, 64), out.shape

    ref = jax.block_until_ready(_ref_forward(z, params))
    # bf16 MXU operands (f32 accumulation) -> relaxed tolerance vs f32 reference.
    assert jnp.allclose(out, ref, rtol=5e-2, atol=2e-2), (
        float(jnp.max(jnp.abs(out - ref))))

    print("KERNEL_OK")
</pallas_src>

<mosaic_0001>
module attributes {stable_mosaic.version = 11 : i64} {
  func.func @_gemm_bias_act_kernel(%arg0: i32, %arg1: memref<128x576xbf16, #tpu.memory_space<vmem>>, %arg2: memref<576x32xbf16, #tpu.memory_space<vmem>>, %arg3: memref<128x1xf32, #tpu.memory_space<vmem>>, %arg4: memref<128x32xbf16, #tpu.memory_space<vmem>>) attributes {dimension_semantics = [#tpu.dimension_semantics<parallel>], iteration_bounds = array<i64: 1>, scalar_prefetch = 0 : i64, scratch_operands = 0 : i64, tpu.core_type = #tpu.core_type<tc>, window_params = [{pipeline_mode = #tpu.pipeline_mode<synchronous>, transform_indices = @transform_0, window_bounds = array<i64: 128, 576>}, {transform_indices = @transform_1, window_bounds = array<i64: 576, 32>}, {pipeline_mode = #tpu.pipeline_mode<synchronous>, transform_indices = @transform_2, window_bounds = array<i64: 128, 1>}, {transform_indices = @transform_3, window_bounds = array<i64: 128, 32>}]} {
    %c0 = arith.constant 0 : index
    %c0_0 = arith.constant 0 : index
    %0 = vector.load %arg1[%c0, %c0_0] : memref<128x576xbf16, #tpu.memory_space<vmem>>, vector<128x576xbf16>
    %c0_1 = arith.constant 0 : index
    %c0_2 = arith.constant 0 : index
    %1 = vector.load %arg2[%c0_1, %c0_2] : memref<576x32xbf16, #tpu.memory_space<vmem>>, vector<576x32xbf16>
    %cst = arith.constant dense<0.000000e+00> : vector<128x32xf32>
    %2 = tpu.matmul %0, %1, %cst {dimension_numbers = #tpu.dot_dimension_numbers<[1], [0], [0], [1], [0, 0, 1, 1], [], []>} : vector<128x576xbf16>, vector<576x32xbf16>, vector<128x32xf32> -> vector<128x32xf32>
    %c0_3 = arith.constant 0 : index
    %c0_4 = arith.constant 0 : index
    %3 = vector.load %arg3[%c0_3, %c0_4] : memref<128x1xf32, #tpu.memory_space<vmem>>, vector<128x1xf32>
    %4 = vector.broadcast %3 : vector<128x1xf32> to vector<128x32xf32>
    %5 = arith.addf %2, %4 : vector<128x32xf32>
    %cst_5 = arith.constant 0.000000e+00 : f32
    %6 = vector.broadcast %cst_5 : f32 to vector<128x32xf32>
    %7 = arith.cmpf oge, %5, %6 : vector<128x32xf32>
    %cst_6 = arith.constant 2.000000e-01 : f32
    %8 = vector.broadcast %cst_6 : f32 to vector<128x32xf32>
    %9 = arith.mulf %8, %5 : vector<128x32xf32>
    %10 = arith.select %7, %5, %9 : vector<128x32xi1>, vector<128x32xf32>
    %11 = arith.truncf %10 : vector<128x32xf32> to vector<128x32xbf16>
    %c0_7 = arith.constant 0 : index
    %c0_8 = arith.constant 0 : index
    %12 = vector.load %arg4[%c0_7, %c0_8] : memref<128x32xbf16, #tpu.memory_space<vmem>>, vector<128x32xbf16>
    tpu.vector_store %arg4[%c0_7, %c0_8], %11 {strides = array<i32>} : memref<128x32xbf16, #tpu.memory_space<vmem>>, vector<128x32xbf16>,
    return
  }
  func.func @transform_0(%arg0: i32) -> (i32, i32) {
    %c0_i32 = arith.constant 0 : i32
    %c0_i32_0 = arith.constant 0 : i32
    %c0_i32_1 = arith.constant 0 : i32
    return %c0_i32, %c0_i32_0 : i32, i32
  }
  func.func @transform_1(%arg0: i32) -> (i32, i32) {
    %c0_i32 = arith.constant 0 : i32
    %c0_i32_0 = arith.constant 0 : i32
    return %c0_i32, %arg0 : i32, i32
  }
  func.func @transform_2(%arg0: i32) -> (i32, i32) {
    %c0_i32 = arith.constant 0 : i32
    %c0_i32_0 = arith.constant 0 : i32
    %c0_i32_1 = arith.constant 0 : i32
    return %c0_i32, %c0_i32_0 : i32, i32
  }
  func.func @transform_3(%arg0: i32) -> (i32, i32) {
    %c0_i32 = arith.constant 0 : i32
    %c0_i32_0 = arith.constant 0 : i32
    return %c0_i32, %arg0 : i32, i32
  }
}

module attributes {stable_mosaic.version = 11 : i64} {
  func.func @_gemm_bias_act_kernel(%arg0: i32, %arg1: memref<64x288xbf16, #tpu.memory_space<vmem>>, %arg2: memref<288x128xbf16, #tpu.memory_space<vmem>>, %arg3: memref<64x1xf32, #tpu.memory_space<vmem>>, %arg4: memref<64x128xbf16, #tpu.memory_space<vmem>>) attributes {dimension_semantics = [#tpu.dimension_semantics<parallel>], iteration_bounds = array<i64: 1>, scalar_prefetch = 0 : i64, scratch_operands = 0 : i64, tpu.core_type = #tpu.core_type<tc>, window_params = [{pipeline_mode = #tpu.pipeline_mode<synchronous>, transform_indices = @transform_0, window_bounds = array<i64: 64, 288>}, {transform_indices = @transform_1, window_bounds = array<i64: 288, 128>}, {pipeline_mode = #tpu.pipeline_mode<synchronous>, transform_indices = @transform_2, window_bounds = array<i64: 64, 1>}, {transform_indices = @transform_3, window_bounds = array<i64: 64, 128>}]} {
    %c0 = arith.constant 0 : index
    %c0_0 = arith.constant 0 : index
    %0 = vector.load %arg1[%c0, %c0_0] : memref<64x288xbf16, #tpu.memory_space<vmem>>, vector<64x288xbf16>
    %c0_1 = arith.constant 0 : index
    %c0_2 = arith.constant 0 : index
    %1 = vector.load %arg2[%c0_1, %c0_2] : memref<288x128xbf16, #tpu.memory_space<vmem>>, vector<288x128xbf16>
    %cst = arith.constant dense<0.000000e+00> : vector<64x128xf32>
    %2 = tpu.matmul %0, %1, %cst {dimension_numbers = #tpu.dot_dimension_numbers<[1], [0], [0], [1], [0, 0, 1, 1], [], []>} : vector<64x288xbf16>, vector<288x128xbf16>, vector<64x128xf32> -> vector<64x128xf32>
    %c0_3 = arith.constant 0 : index
    %c0_4 = arith.constant 0 : index
    %3 = vector.load %arg3[%c0_3, %c0_4] : memref<64x1xf32, #tpu.memory_space<vmem>>, vector<64x1xf32>
    %4 = vector.broadcast %3 : vector<64x1xf32> to vector<64x128xf32>
    %5 = arith.addf %2, %4 : vector<64x128xf32>
    %cst_5 = arith.constant 0.000000e+00 : f32
    %6 = vector.broadcast %cst_5 : f32 to vector<64x128xf32>
    %7 = arith.cmpf oge, %5, %6 : vector<64x128xf32>
    %cst_6 = arith.constant 2.000000e-01 : f32
    %8 = vector.broadcast %cst_6 : f32 to vector<64x128xf32>
    %9 = arith.mulf %8, %5 : vector<64x128xf32>
    %10 = arith.select %7, %5, %9 : vector<64x128xi1>, vector<64x128xf32>
    %11 = arith.truncf %10 : vector<64x128xf32> to vector<64x128xbf16>
    %c0_7 = arith.constant 0 : index
    %c0_8 = arith.constant 0 : index
    %12 = vector.load %arg4[%c0_7, %c0_8] : memref<64x128xbf16, #tpu.memory_space<vmem>>, vector<64x128xbf16>
    tpu.vector_store %arg4[%c0_7, %c0_8], %11 {strides = array<i32>} : memref<64x128xbf16, #tpu.memory_space<vmem>>, vector<64x128xbf16>,
    return
  }
  func.func @transform_0(%arg0: i32) -> (i32, i32) {
    %c0_i32 = arith.constant 0 : i32
    %c0_i32_0 = arith.constant 0 : i32
    %c0_i32_1 = arith.constant 0 : i32
    return %c0_i32, %c0_i32_0 : i32, i32
  }
  func.func @transform_1(%arg0: i32) -> (i32, i32) {
    %c0_i32 = arith.constant 0 : i32
    %c0_i32_0 = arith.constant 0 : i32
    return %c0_i32, %arg0 : i32, i32
  }
  func.func @transform_2(%arg0: i32) -> (i32, i32) {
    %c0_i32 = arith.constant 0 : i32
    %c0_i32_0 = arith.constant 0 : i32
    %c0_i32_1 = arith.constant 0 : i32
    return %c0_i32, %c0_i32_0 : i32, i32
  }
  func.func @transform_3(%arg0: i32) -> (i32, i32) {
    %c0_i32 = arith.constant 0 : i32
    %c0_i32_0 = arith.constant 0 : i32
    return %c0_i32, %arg0 : i32, i32
  }
}

module attributes {stable_mosaic.version = 11 : i64} {
  func.func @_gemm_bias_act_kernel(%arg0: i32, %arg1: memref<32x144xbf16, #tpu.memory_space<vmem>>, %arg2: memref<144x512xbf16, #tpu.memory_space<vmem>>, %arg3: memref<32x1xf32, #tpu.memory_space<vmem>>, %arg4: memref<32x512xbf16, #tpu.memory_space<vmem>>) attributes {dimension_semantics = [#tpu.dimension_semantics<parallel>], iteration_bounds = array<i64: 1>, scalar_prefetch = 0 : i64, scratch_operands = 0 : i64, tpu.core_type = #tpu.core_type<tc>, window_params = [{pipeline_mode = #tpu.pipeline_mode<synchronous>, transform_indices = @transform_0, window_bounds = array<i64: 32, 144>}, {transform_indices = @transform_1, window_bounds = array<i64: 144, 512>}, {pipeline_mode = #tpu.pipeline_mode<synchronous>, transform_indices = @transform_2, window_bounds = array<i64: 32, 1>}, {transform_indices = @transform_3, window_bounds = array<i64: 32, 512>}]} {
    %c0 = arith.constant 0 : index
    %c0_0 = arith.constant 0 : index
    %0 = vector.load %arg1[%c0, %c0_0] : memref<32x144xbf16, #tpu.memory_space<vmem>>, vector<32x144xbf16>
    %c0_1 = arith.constant 0 : index
    %c0_2 = arith.constant 0 : index
    %1 = vector.load %arg2[%c0_1, %c0_2] : memref<144x512xbf16, #tpu.memory_space<vmem>>, vector<144x512xbf16>
    %cst = arith.constant dense<0.000000e+00> : vector<32x512xf32>
    %2 = tpu.matmul %0, %1, %cst {dimension_numbers = #tpu.dot_dimension_numbers<[1], [0], [0], [1], [0, 0, 1, 1], [], []>} : vector<32x144xbf16>, vector<144x512xbf16>, vector<32x512xf32> -> vector<32x512xf32>
    %c0_3 = arith.constant 0 : index
    %c0_4 = arith.constant 0 : index
    %3 = vector.load %arg3[%c0_3, %c0_4] : memref<32x1xf32, #tpu.memory_space<vmem>>, vector<32x1xf32>
    %4 = vector.broadcast %3 : vector<32x1xf32> to vector<32x512xf32>
    %5 = arith.addf %2, %4 : vector<32x512xf32>
    %cst_5 = arith.constant 0.000000e+00 : f32
    %6 = vector.broadcast %cst_5 : f32 to vector<32x512xf32>
    %7 = arith.cmpf oge, %5, %6 : vector<32x512xf32>
    %cst_6 = arith.constant 2.000000e-01 : f32
    %8 = vector.broadcast %cst_6 : f32 to vector<32x512xf32>
    %9 = arith.mulf %8, %5 : vector<32x512xf32>
    %10 = arith.select %7, %5, %9 : vector<32x512xi1>, vector<32x512xf32>
    %11 = arith.truncf %10 : vector<32x512xf32> to vector<32x512xbf16>
    %c0_7 = arith.constant 0 : index
    %c0_8 = arith.constant 0 : index
    %12 = vector.load %arg4[%c0_7, %c0_8] : memref<32x512xbf16, #tpu.memory_space<vmem>>, vector<32x512xbf16>
    tpu.vector_store %arg4[%c0_7, %c0_8], %11 {strides = array<i32>} : memref<32x512xbf16, #tpu.memory_space<vmem>>, vector<32x512xbf16>,
    return
  }
  func.func @transform_0(%arg0: i32) -> (i32, i32) {
    %c0_i32 = arith.constant 0 : i32
    %c0_i32_0 = arith.constant 0 : i32
    %c0_i32_1 = arith.constant 0 : i32
    return %c0_i32, %c0_i32_0 : i32, i32
  }
  func.func @transform_1(%arg0: i32) -> (i32, i32) {
    %c0_i32 = arith.constant 0 : i32
    %c0_i32_0 = arith.constant 0 : i32
    return %c0_i32, %arg0 : i32, i32
  }
  func.func @transform_2(%arg0: i32) -> (i32, i32) {
    %c0_i32 = arith.constant 0 : i32
    %c0_i32_0 = arith.constant 0 : i32
    %c0_i32_1 = arith.constant 0 : i32
    return %c0_i32, %c0_i32_0 : i32, i32
  }
  func.func @transform_3(%arg0: i32) -> (i32, i32) {
    %c0_i32 = arith.constant 0 : i32
    %c0_i32_0 = arith.constant 0 : i32
    return %c0_i32, %arg0 : i32, i32
  }
}

module attributes {stable_mosaic.version = 11 : i64} {
  func.func @_gemm_bias_act_kernel(%arg0: i32, %arg1: memref<12x72xbf16, #tpu.memory_space<vmem>>, %arg2: memref<72x2048xbf16, #tpu.memory_space<vmem>>, %arg3: memref<12x1xf32, #tpu.memory_space<vmem>>, %arg4: memref<12x2048xf32, #tpu.memory_space<vmem>>) attributes {dimension_semantics = [#tpu.dimension_semantics<parallel>], iteration_bounds = array<i64: 1>, scalar_prefetch = 0 : i64, scratch_operands = 0 : i64, tpu.core_type = #tpu.core_type<tc>, window_params = [{pipeline_mode = #tpu.pipeline_mode<synchronous>, transform_indices = @transform_0, window_bounds = array<i64: 12, 72>}, {transform_indices = @transform_1, window_bounds = array<i64: 72, 2048>}, {pipeline_mode = #tpu.pipeline_mode<synchronous>, transform_indices = @transform_2, window_bounds = array<i64: 12, 1>}, {transform_indices = @transform_3, window_bounds = array<i64: 12, 2048>}]} {
    %c0 = arith.constant 0 : index
    %c0_0 = arith.constant 0 : index
    %0 = vector.load %arg1[%c0, %c0_0] : memref<12x72xbf16, #tpu.memory_space<vmem>>, vector<12x72xbf16>
    %c0_1 = arith.constant 0 : index
    %c0_2 = arith.constant 0 : index
    %1 = vector.load %arg2[%c0_1, %c0_2] : memref<72x2048xbf16, #tpu.memory_space<vmem>>, vector<72x2048xbf16>
    %cst = arith.constant dense<0.000000e+00> : vector<12x2048xf32>
    %2 = tpu.matmul %0, %1, %cst {dimension_numbers = #tpu.dot_dimension_numbers<[1], [0], [0], [1], [0, 0, 1, 1], [], []>} : vector<12x72xbf16>, vector<72x2048xbf16>, vector<12x2048xf32> -> vector<12x2048xf32>
    %c0_3 = arith.constant 0 : index
    %c0_4 = arith.constant 0 : index
    %3 = vector.load %arg3[%c0_3, %c0_4] : memref<12x1xf32, #tpu.memory_space<vmem>>, vector<12x1xf32>
    %4 = vector.broadcast %3 : vector<12x1xf32> to vector<12x2048xf32>
    %5 = arith.addf %2, %4 : vector<12x2048xf32>
    %6 = math.tanh %5 : vector<12x2048xf32>
    %c0_5 = arith.constant 0 : index
    %c0_6 = arith.constant 0 : index
    %7 = vector.load %arg4[%c0_5, %c0_6] : memref<12x2048xf32, #tpu.memory_space<vmem>>, vector<12x2048xf32>
    tpu.vector_store %arg4[%c0_5, %c0_6], %6 {strides = array<i32>} : memref<12x2048xf32, #tpu.memory_space<vmem>>, vector<12x2048xf32>,
    return
  }
  func.func @transform_0(%arg0: i32) -> (i32, i32) {
    %c0_i32 = arith.constant 0 : i32
    %c0_i32_0 = arith.constant 0 : i32
    %c0_i32_1 = arith.constant 0 : i32
    return %c0_i32, %c0_i32_0 : i32, i32
  }
  func.func @transform_1(%arg0: i32) -> (i32, i32) {
    %c0_i32 = arith.constant 0 : i32
    %c0_i32_0 = arith.constant 0 : i32
    return %c0_i32, %arg0 : i32, i32
  }
  func.func @transform_2(%arg0: i32) -> (i32, i32) {
    %c0_i32 = arith.constant 0 : i32
    %c0_i32_0 = arith.constant 0 : i32
    %c0_i32_1 = arith.constant 0 : i32
    return %c0_i32, %c0_i32_0 : i32, i32
  }
  func.func @transform_3(%arg0: i32) -> (i32, i32) {
    %c0_i32 = arith.constant 0 : i32
    %c0_i32_0 = arith.constant 0 : i32
    return %c0_i32, %arg0 : i32, i32
  }
}

</mosaic_0001>

<llo_original>
// kernel: generator_forward.4
$region0: #{generator_forward.4}
  #allocation0 [shape = 'u32[]', space=smem, size = 0x4, offset = 0x4, fixed_abs, tag = 'smem constant byte address 0x4 - core index']
  #allocation1 [shape = 'u32[72,128]{1,0:T(1,128)}', space=vmem, size = 0x9000, scoped, tag = 'internal scratch']
  %s0 = inlined_call_operand.vmem [shape: bf16[128,576], index: 0, kind: input, shape index: {}]
  %s1 = inlined_call_operand.vmem [shape: bf16[576,32], index: 1, kind: input, shape index: {}]
  %s2 = inlined_call_operand.vmem [shape: f32[128,1], index: 2, kind: input, shape index: {}]
  %s3 = inlined_call_operand.vmem [shape: bf16[128,32], index: 3, kind: output, shape index: {}]
  %s4 = sld [smem:[#allocation0]]
  $region22: #{generator_forward.4} parent=0
    _
  %s6 = ssub.s32 1, %s4
  %s7 = scalar_select 0, %s6, %s4
  // Predicated region
  $region2: #{generator_forward.4} parent=0 // pred_check
    _
  $region3: #{generator_forward.4} parent=0 // pred_check_branch
    %9 = sbr.rel (0) target = $region5
  $region4: #{generator_forward.4} parent=0 // pred_region
    _
  $region5: #{generator_forward.4} parent=0 // pred_fallthru
    _
  // Predicated region
  $region6: #{generator_forward.4} parent=0 // pred_check
    _
  $region7: #{generator_forward.4} parent=0 // pred_check_branch
    %11 = sbr.rel (0) target = $region9
  $region8: #{generator_forward.4} parent=0 // pred_region
    _
  $region9: #{generator_forward.4} parent=0 // pred_fallthru
    _
  // Predicated region
  $region10: #{generator_forward.4} parent=0 // pred_check
    _
  $region11: #{generator_forward.4} parent=0 // pred_check_branch
    %13 = sbr.rel (0) target = $region13
  $region12: #{generator_forward.4} parent=0 // pred_region
    _
  $region13: #{generator_forward.4} parent=0 // pred_fallthru
    _
  %v15 = vld [vmem:[%s0] sm:$0xff]
  %v16 = vld [vmem:[%s0 + $0x8] sm:$0xff]
  %v17 = vld [vmem:[%s0 + $0x10] sm:$0xf]
  %v18 = vld [vmem:[%s0 + $0x14] sm:$0xff]
  %v19 = vld [vmem:[%s0 + $0x1c] sm:$0xff]
  %v20 = vld [vmem:[%s0 + $0x24] sm:$0xf]
  %v21 = vld [vmem:[%s0 + $0x28] sm:$0xff]
  %v22 = vld [vmem:[%s0 + $0x30] sm:$0xff]
  %v23 = vld [vmem:[%s0 + $0x38] sm:$0xf]
  %v24 = vld [vmem:[%s0 + $0x3c] sm:$0xff]
  %v25 = vld [vmem:[%s0 + $0x44] sm:$0xff]
  %v26 = vld [vmem:[%s0 + $0x4c] sm:$0xf]
  %v27 = vld [vmem:[%s0 + $0x50] sm:$0xff]
  %v28 = vld [vmem:[%s0 + $0x58] sm:$0xff]
  %v29 = vld [vmem:[%s0 + $0x60] sm:$0xf]
  %v30 = vld [vmem:[%s0 + $0x64] sm:$0xff]
  %v31 = vld [vmem:[%s0 + $0x6c] sm:$0xff]
  %v32 = vld [vmem:[%s0 + $0x74] sm:$0xf]
  %v33 = vld [vmem:[%s0 + $0x78] sm:$0xff]
  %v34 = vld [vmem:[%s0 + $0x80] sm:$0xff]
  %v35 = vld [vmem:[%s0 + $0x88] sm:$0xf]
  %v36 = vld [vmem:[%s0 + $0x8c] sm:$0xff]
  %v37 = vld [vmem:[%s0 + $0x94] sm:$0xff]
  %v38 = vld [vmem:[%s0 + $0x9c] sm:$0xf]
  %v39 = vld [vmem:[%s0 + $0xa0] sm:$0xff]
  %v40 = vld [vmem:[%s0 + $0xa8] sm:$0xff]
  %v41 = vld [vmem:[%s0 + $0xb0] sm:$0xf]
  %v42 = vld [vmem:[%s0 + $0xb4] sm:$0xff]
  %v43 = vld [vmem:[%s0 + $0xbc] sm:$0xff]
  %v44 = vld [vmem:[%s0 + $0xc4] sm:$0xf]
  %v45 = vld [vmem:[%s0 + $0xc8] sm:$0xff]
  %v46 = vld [vmem:[%s0 + $0xd0] sm:$0xff]
  %v47 = vld [vmem:[%s0 + $0xd8] sm:$0xf]
  %v48 = vld [vmem:[%s0 + $0xdc] sm:$0xff]
  %v49 = vld [vmem:[%s0 + $0xe4] sm:$0xff]
  %v50 = vld [vmem:[%s0 + $0xec] sm:$0xf]
  %v51 = vld [vmem:[%s0 + $0xf0] sm:$0xff]
  %v52 = vld [vmem:[%s0 + $0xf8] sm:$0xff]
  %v53 = vld [vmem:[%s0 + $0x100] sm:$0xf]
  %v54 = vld [vmem:[%s0 + $0x104] sm:$0xff]
  %v55 = vld [vmem:[%s0 + $0x10c] sm:$0xff]
  %v56 = vld [vmem:[%s0 + $0x114] sm:$0xf]
  %v57 = vld [vmem:[%s0 + $0x118] sm:$0xff]
  %v58 = vld [vmem:[%s0 + $0x120] sm:$0xff]
  %v59 = vld [vmem:[%s0 + $0x128] sm:$0xf]
  %v60 = vld [vmem:[%s0 + $0x12c] sm:$0xff]
  %v61 = vld [vmem:[%s0 + $0x134] sm:$0xff]
  %v62 = vld [vmem:[%s0 + $0x13c] sm:$0xf]
  %v63 = vld [vmem:[%s1] sm:$0xf]
  %v64 = vld [vmem:[%s1 + $0x4] sm:$0xf]
  %v65 = vld [vmem:[%s1 + $0x8] sm:$0xf]
  %v66 = vld [vmem:[%s1 + $0xc] sm:$0xf]
  %v67 = vld [vmem:[%s1 + $0x10] sm:$0xf]
  %v68 = vld [vmem:[%s1 + $0x14] sm:$0xf]
  %v69 = vld [vmem:[%s1 + $0x18] sm:$0xf]
  %v70 = vld [vmem:[%s1 + $0x1c] sm:$0xf]
  %v71 = vld [vmem:[%s1 + $0x20] sm:$0xf]
  %v72 = vld [vmem:[%s1 + $0x24] sm:$0xf]
  %v73 = vld [vmem:[%s1 + $0x28] sm:$0xf]
  %v74 = vld [vmem:[%s1 + $0x2c] sm:$0xf]
  %v75 = vld [vmem:[%s1 + $0x30] sm:$0xf]
  %v76 = vld [vmem:[%s1 + $0x34] sm:$0xf]
  %v77 = vld [vmem:[%s1 + $0x38] sm:$0xf]
  %v78 = vld [vmem:[%s1 + $0x3c] sm:$0xf]
  %v79 = vld [vmem:[%s1 + $0x40] sm:$0xf]
  %v80 = vld [vmem:[%s1 + $0x44] sm:$0xf]
  %v81 = vld [vmem:[%s1 + $0x48] sm:$0xf]
  %v82 = vld [vmem:[%s1 + $0x4c] sm:$0xf]
  %v83 = vld [vmem:[%s1 + $0x50] sm:$0xf]
  %v84 = vld [vmem:[%s1 + $0x54] sm:$0xf]
  %v85 = vld [vmem:[%s1 + $0x58] sm:$0xf]
  %v86 = vld [vmem:[%s1 + $0x5c] sm:$0xf]
  %v87 = vld [vmem:[%s1 + $0x60] sm:$0xf]
  %v88 = vld [vmem:[%s1 + $0x64] sm:$0xf]
  %v89 = vld [vmem:[%s1 + $0x68] sm:$0xf]
  %v90 = vld [vmem:[%s1 + $0x6c] sm:$0xf]
  %v91 = vld [vmem:[%s1 + $0x70] sm:$0xf]
  %v92 = vld [vmem:[%s1 + $0x74] sm:$0xf]
  %v93 = vld [vmem:[%s1 + $0x78] sm:$0xf]
  %v94 = vld [vmem:[%s1 + $0x7c] sm:$0xf]
  %v95 = vld [vmem:[%s1 + $0x80] sm:$0xf]
  %v96 = vld [vmem:[%s1 + $0x84] sm:$0xf]
  %v97 = vld [vmem:[%s1 + $0x88] sm:$0xf]
  %v98 = vld [vmem:[%s1 + $0x8c] sm:$0xf]
  %v99 = vld [vmem:[%s1 + $0x90] sm:$0xf]
  %v100 = vld [vmem:[%s1 + $0x94] sm:$0xf]
  %v101 = vld [vmem:[%s1 + $0x98] sm:$0xf]
  %v102 = vld [vmem:[%s1 + $0x9c] sm:$0xf]
  %v103 = vld [vmem:[%s1 + $0xa0] sm:$0xf]
  %v104 = vld [vmem:[%s1 + $0xa4] sm:$0xf]
  %v105 = vld [vmem:[%s1 + $0xa8] sm:$0xf]
  %v106 = vld [vmem:[%s1 + $0xac] sm:$0xf]
  %v107 = vld [vmem:[%s1 + $0xb0] sm:$0xf]
  %v108 = vld [vmem:[%s1 + $0xb4] sm:$0xf]
  %v109 = vld [vmem:[%s1 + $0xb8] sm:$0xf]
  %v110 = vld [vmem:[%s1 + $0xbc] sm:$0xf]
  %v111 = vld [vmem:[%s1 + $0xc0] sm:$0xf]
  %v112 = vld [vmem:[%s1 + $0xc4] sm:$0xf]
  %v113 = vld [vmem:[%s1 + $0xc8] sm:$0xf]
  %v114 = vld [vmem:[%s1 + $0xcc] sm:$0xf]
  %v115 = vld [vmem:[%s1 + $0xd0] sm:$0xf]
  %v116 = vld [vmem:[%s1 + $0xd4] sm:$0xf]
  %v117 = vld [vmem:[%s1 + $0xd8] sm:$0xf]
  %v118 = vld [vmem:[%s1 + $0xdc] sm:$0xf]
  %v119 = vld [vmem:[%s1 + $0xe0] sm:$0xf]
  %v120 = vld [vmem:[%s1 + $0xe4] sm:$0xf]
  %v121 = vld [vmem:[%s1 + $0xe8] sm:$0xf]
  %v122 = vld [vmem:[%s1 + $0xec] sm:$0xf]
  %v123 = vld [vmem:[%s1 + $0xf0] sm:$0xf]
  %v124 = vld [vmem:[%s1 + $0xf4] sm:$0xf]
  %v125 = vld [vmem:[%s1 + $0xf8] sm:$0xf]
  %v126 = vld [vmem:[%s1 + $0xfc] sm:$0xf]
  %v127 = vld [vmem:[%s1 + $0x100] sm:$0xf]
  %v128 = vld [vmem:[%s1 + $0x104] sm:$0xf]
  %v129 = vld [vmem:[%s1 + $0x108] sm:$0xf]
  %v130 = vld [vmem:[%s1 + $0x10c] sm:$0xf]
  %v131 = vld [vmem:[%s1 + $0x110] sm:$0xf]
  %v132 = vld [vmem:[%s1 + $0x114] sm:$0xf]
  %v133 = vld [vmem:[%s1 + $0x118] sm:$0xf]
  %v134 = vld [vmem:[%s1 + $0x11c] sm:$0xf]
  %v135 = vld [vmem:[%s2] sm:$0xff]
  %v136 = vld [vmem:[%s2 + $0x8] sm:$0xff]
  %v137 = vld [vmem:[%s2 + $0x10] sm:$0xff]
  %v138 = vld [vmem:[%s2 + $0x18] sm:$0xff]
  %v139 = vld [vmem:[%s2 + $0x20] sm:$0xff]
  %v140 = vld [vmem:[%s2 + $0x28] sm:$0xff]
  %v141 = vld [vmem:[%s2 + $0x30] sm:$0xff]
  %v142 = vld [vmem:[%s2 + $0x38] sm:$0xff]
  %v143 = vld [vmem:[%s2 + $0x40] sm:$0xff]
  %v144 = vld [vmem:[%s2 + $0x48] sm:$0xff]
  %v145 = vld [vmem:[%s2 + $0x50] sm:$0xff]
  %v146 = vld [vmem:[%s2 + $0x58] sm:$0xff]
  %v147 = vld [vmem:[%s2 + $0x60] sm:$0xff]
  %v148 = vld [vmem:[%s2 + $0x68] sm:$0xff]
  %v149 = vld [vmem:[%s2 + $0x70] sm:$0xff]
  %v150 = vld [vmem:[%s2 + $0x78] sm:$0xff]
  %152 = vset.pattern.permute.xlu0 0
  %153 = vperm.xlu0 %152, %v135
  %v154 = vpop.permute.xlu0 %153
  %157 = vset.pattern.permute.xlu0 0
  %158 = vperm.xlu0 %157, %v136
  %v159 = vpop.permute.xlu0 %158
  %162 = vset.pattern.permute.xlu0 0
  %163 = vperm.xlu0 %162, %v137
  %v164 = vpop.permute.xlu0 %163
  %167 = vset.pattern.permute.xlu0 0
  %168 = vperm.xlu0 %167, %v138
  %v169 = vpop.permute.xlu0 %168
  %172 = vset.pattern.permute.xlu0 0
  %173 = vperm.xlu0 %172, %v139
  %v174 = vpop.permute.xlu0 %173
  %177 = vset.pattern.permute.xlu0 0
  %178 = vperm.xlu0 %177, %v140
  %v179 = vpop.permute.xlu0 %178
  %182 = vset.pattern.permute.xlu0 0
  %183 = vperm.xlu0 %182, %v141
  %v184 = vpop.permute.xlu0 %183
  %187 = vset.pattern.permute.xlu0 0
  %188 = vperm.xlu0 %187, %v142
  %v189 = vpop.permute.xlu0 %188
  %192 = vset.pattern.permute.xlu0 0
  %193 = vperm.xlu0 %192, %v143
  %v194 = vpop.permute.xlu0 %193
  %197 = vset.pattern.permute.xlu0 0
  %198 = vperm.xlu0 %197, %v144
  %v199 = vpop.permute.xlu0 %198
  %202 = vset.pattern.permute.xlu0 0
  %203 = vperm.xlu0 %202, %v145
  %v204 = vpop.permute.xlu0 %203
  %207 = vset.pattern.permute.xlu0 0
  %208 = vperm.xlu0 %207, %v146
  %v209 = vpop.permute.xlu0 %208
  %212 = vset.pattern.permute.xlu0 0
  %213 = vperm.xlu0 %212, %v147
  %v214 = vpop.permute.xlu0 %213
  %217 = vset.pattern.permute.xlu0 0
  %218 = vperm.xlu0 %217, %v148
  %v219 = vpop.permute.xlu0 %218
  %222 = vset.pattern.permute.xlu0 0
  %223 = vperm.xlu0 %222, %v149
  %v224 = vpop.permute.xlu0 %223
  %227 = vset.pattern.permute.xlu0 0
  %228 = vperm.xlu0 %227, %v150
  %v229 = vpop.permute.xlu0 %228
  %v279 = vunpack.c.l.b16 %v15
  %v280 = vunpack.c.h.b16 %v15
  %v281 = vunpack.c.l.b16 %v16
  %v282 = vunpack.c.h.b16 %v16
  %v283 = vunpack.c.l.b16 %v17
  %v284 = vunpack.c.l.b16 %v18
  %v285 = vunpack.c.h.b16 %v18
  %v286 = vunpack.c.l.b16 %v19
  %v287 = vunpack.c.h.b16 %v19
  %v288 = vunpack.c.l.b16 %v20
  %v289 = vunpack.c.l.b16 %v21
  %v290 = vunpack.c.h.b16 %v21
  %v291 = vunpack.c.l.b16 %v22
  %v292 = vunpack.c.h.b16 %v22
  %v293 = vunpack.c.l.b16 %v23
  %v294 = vunpack.c.l.b16 %v24
  %v295 = vunpack.c.h.b16 %v24
  %v296 = vunpack.c.l.b16 %v25
  %v297 = vunpack.c.h.b16 %v25
  %v298 = vunpack.c.l.b16 %v26
  %v299 = vunpack.c.l.b16 %v27
  %v300 = vunpack.c.h.b16 %v27
  %v301 = vunpack.c.l.b16 %v28
  %v302 = vunpack.c.h.b16 %v28
  %v303 = vunpack.c.l.b16 %v29
  %v304 = vunpack.c.l.b16 %v30
  %v305 = vunpack.c.h.b16 %v30
  %v306 = vunpack.c.l.b16 %v31
  %v307 = vunpack.c.h.b16 %v31
  %v308 = vunpack.c.l.b16 %v32
  %v309 = vunpack.c.l.b16 %v33
  %v310 = vunpack.c.h.b16 %v33
  %v311 = vunpack.c.l.b16 %v34
  %v312 = vunpack.c.h.b16 %v34
  %v313 = vunpack.c.l.b16 %v35
  %v314 = vunpack.c.l.b16 %v36
  %v315 = vunpack.c.h.b16 %v36
  %v316 = vunpack.c.l.b16 %v37
  %v317 = vunpack.c.h.b16 %v37
  %v318 = vunpack.c.l.b16 %v38
  %v319 = vunpack.c.l.b16 %v39
  %v320 = vunpack.c.h.b16 %v39
  %v321 = vunpack.c.l.b16 %v40
  %v322 = vunpack.c.h.b16 %v40
  %v323 = vunpack.c.l.b16 %v41
  %v324 = vunpack.c.l.b16 %v42
  %v325 = vunpack.c.h.b16 %v42
  %v326 = vunpack.c.l.b16 %v43
  %v327 = vunpack.c.h.b16 %v43
  %v328 = vunpack.c.l.b16 %v44
  %v329 = vunpack.c.l.b16 %v45
  %v330 = vunpack.c.h.b16 %v45
  %v331 = vunpack.c.l.b16 %v46
  %v332 = vunpack.c.h.b16 %v46
  %v333 = vunpack.c.l.b16 %v47
  %v334 = vunpack.c.l.b16 %v48
  %v335 = vunpack.c.h.b16 %v48
  %v336 = vunpack.c.l.b16 %v49
  %v337 = vunpack.c.h.b16 %v49
  %v338 = vunpack.c.l.b16 %v50
  %v339 = vunpack.c.l.b16 %v51
  %v340 = vunpack.c.h.b16 %v51
  %v341 = vunpack.c.l.b16 %v52
  %v342 = vunpack.c.h.b16 %v52
  %v343 = vunpack.c.l.b16 %v53
  %v344 = vunpack.c.l.b16 %v54
  %v345 = vunpack.c.h.b16 %v54
  %v346 = vunpack.c.l.b16 %v55
  %v347 = vunpack.c.h.b16 %v55
  %v348 = vunpack.c.l.b16 %v56
  %v349 = vunpack.c.l.b16 %v57
  %v350 = vunpack.c.h.b16 %v57
  %v351 = vunpack.c.l.b16 %v58
  %v352 = vunpack.c.h.b16 %v58
  %v353 = vunpack.c.l.b16 %v59
  %v354 = vunpack.c.l.b16 %v60
  %v355 = vunpack.c.h.b16 %v60
  %v356 = vunpack.c.l.b16 %v61
  %v357 = vunpack.c.h.b16 %v61
  %v358 = vunpack.c.l.b16 %v62
  %v359 = vpack.c.b16 %v284, %v279
  %v360 = vpack.c.b16 %v285, %v280
  %v361 = vpack.c.b16 %v286, %v281
  %v362 = vpack.c.b16 %v287, %v282
  %v363 = vpack.c.b16 %v288, %v283
  %v364 = vpack.c.b16 %v294, %v289
  %v365 = vpack.c.b16 %v295, %v290
  %v366 = vpack.c.b16 %v296, %v291
  %v367 = vpack.c.b16 %v297, %v292
  %v368 = vpack.c.b16 %v298, %v293
  %v369 = vpack.c.b16 %v304, %v299
  %v370 = vpack.c.b16 %v305, %v300
  %v371 = vpack.c.b16 %v306, %v301
  %v372 = vpack.c.b16 %v307, %v302
  %v373 = vpack.c.b16 %v308, %v303
  %v374 = vpack.c.b16 %v314, %v309
  %v375 = vpack.c.b16 %v315, %v310
  %v376 = vpack.c.b16 %v316, %v311
  %v377 = vpack.c.b16 %v317, %v312
  %v378 = vpack.c.b16 %v318, %v313
  %v379 = vpack.c.b16 %v324, %v319
  %v380 = vpack.c.b16 %v325, %v320
  %v381 = vpack.c.b16 %v326, %v321
  %v382 = vpack.c.b16 %v327, %v322
  %v383 = vpack.c.b16 %v328, %v323
  %v384 = vpack.c.b16 %v334, %v329
  %v385 = vpack.c.b16 %v335, %v330
  %v386 = vpack.c.b16 %v336, %v331
  %v387 = vpack.c.b16 %v337, %v332
  %v388 = vpack.c.b16 %v338, %v333
  %v389 = vpack.c.b16 %v344, %v339
  %v390 = vpack.c.b16 %v345, %v340
  %v391 = vpack.c.b16 %v346, %v341
  %v392 = vpack.c.b16 %v347, %v342
  %v393 = vpack.c.b16 %v348, %v343
  %v394 = vpack.c.b16 %v354, %v349
  %v395 = vpack.c.b16 %v355, %v350
  %v396 = vpack.c.b16 %v356, %v351
  %v397 = vpack.c.b16 %v357, %v352
  %v398 = vpack.c.b16 %v358, %v353
  %v503 = vunpack.c.l.b16 %v63
  %v504 = vunpack.c.l.b16 %v64
  %v505 = vunpack.c.l.b16 %v65
  %v506 = vunpack.c.l.b16 %v66
  %v507 = vunpack.c.l.b16 %v67
  %v508 = vunpack.c.l.b16 %v68
  %v509 = vunpack.c.l.b16 %v69
  %v510 = vunpack.c.l.b16 %v70
  %v511 = vunpack.c.l.b16 %v71
  %v512 = vunpack.c.l.b16 %v72
  %v513 = vunpack.c.l.b16 %v73
  %v514 = vunpack.c.l.b16 %v74
  %v515 = vunpack.c.l.b16 %v75
  %v516 = vunpack.c.l.b16 %v76
  %v517 = vunpack.c.l.b16 %v77
  %v518 = vunpack.c.l.b16 %v78
  %v519 = vunpack.c.l.b16 %v79
  %v520 = vunpack.c.l.b16 %v80
  %v521 = vunpack.c.l.b16 %v81
  %v522 = vunpack.c.l.b16 %v82
  %v523 = vunpack.c.l.b16 %v83
  %v524 = vunpack.c.l.b16 %v84
  %v525 = vunpack.c.l.b16 %v85
  %v526 = vunpack.c.l.b16 %v86
  %v527 = vunpack.c.l.b16 %v87
  %v528 = vunpack.c.l.b16 %v88
  %v529 = vunpack.c.l.b16 %v89
  %v530 = vunpack.c.l.b16 %v90
  %v531 = vunpack.c.l.b16 %v91
  %v532 = vunpack.c.l.b16 %v92
  %v533 = vunpack.c.l.b16 %v93
  %v534 = vunpack.c.l.b16 %v94
  %v535 = vunpack.c.l.b16 %v95
  %v536 = vunpack.c.l.b16 %v96
  %v537 = vunpack.c.l.b16 %v97
  %v538 = vunpack.c.l.b16 %v98
  %v539 = vunpack.c.l.b16 %v99
  %v540 = vunpack.c.l.b16 %v100
  %v541 = vunpack.c.l.b16 %v101
  %v542 = vunpack.c.l.b16 %v102
  %v543 = vunpack.c.l.b16 %v103
  %v544 = vunpack.c.l.b16 %v104
  %v545 = vunpack.c.l.b16 %v105
  %v546 = vunpack.c.l.b16 %v106
  %v547 = vunpack.c.l.b16 %v107
  %v548 = vunpack.c.l.b16 %v108
  %v549 = vunpack.c.l.b16 %v109
  %v550 = vunpack.c.l.b16 %v110
  %v551 = vunpack.c.l.b16 %v111
  %v552 = vunpack.c.l.b16 %v112
  %v553 = vunpack.c.l.b16 %v113
  %v554 = vunpack.c.l.b16 %v114
  %v555 = vunpack.c.l.b16 %v115
  %v556 = vunpack.c.l.b16 %v116
  %v557 = vunpack.c.l.b16 %v117
  %v558 = vunpack.c.l.b16 %v118
  %v559 = vunpack.c.l.b16 %v119
  %v560 = vunpack.c.l.b16 %v120
  %v561 = vunpack.c.l.b16 %v121
  %v562 = vunpack.c.l.b16 %v122
  %v563 = vunpack.c.l.b16 %v123
  %v564 = vunpack.c.l.b16 %v124
  %v565 = vunpack.c.l.b16 %v125
  %v566 = vunpack.c.l.b16 %v126
  %v567 = vunpack.c.l.b16 %v127
  %v568 = vunpack.c.l.b16 %v128
  %v569 = vunpack.c.l.b16 %v129
  %v570 = vunpack.c.l.b16 %v130
  %v571 = vunpack.c.l.b16 %v131
  %v572 = vunpack.c.l.b16 %v132
  %v573 = vunpack.c.l.b16 %v133
  %v574 = vunpack.c.l.b16 %v134
  %v575 = vpack.c.b16 %v504, %v503
  %v576 = vpack.c.b16 %v506, %v505
  %v577 = vpack.c.b16 %v508, %v507
  %v578 = vpack.c.b16 %v510, %v509
  %v579 = vpack.c.b16 %v512, %v511
  %v580 = vpack.c.b16 %v514, %v513
  %v581 = vpack.c.b16 %v516, %v515
  %v582 = vpack.c.b16 %v518, %v517
  %v583 = vpack.c.b16 %v520, %v519
  %v584 = vpack.c.b16 %v522, %v521
  %v585 = vpack.c.b16 %v524, %v523
  %v586 = vpack.c.b16 %v526, %v525
  %v587 = vpack.c.b16 %v528, %v527
  %v588 = vpack.c.b16 %v530, %v529
  %v589 = vpack.c.b16 %v532, %v531
  %v590 = vpack.c.b16 %v534, %v533
  %v591 = vpack.c.b16 %v536, %v535
  %v592 = vpack.c.b16 %v538, %v537
  %v593 = vpack.c.b16 %v540, %v539
  %v594 = vpack.c.b16 %v542, %v541
  %v595 = vpack.c.b16 %v544, %v543
  %v596 = vpack.c.b16 %v546, %v545
  %v597 = vpack.c.b16 %v548, %v547
  %v598 = vpack.c.b16 %v550, %v549
  %v599 = vpack.c.b16 %v552, %v551
  %v600 = vpack.c.b16 %v554, %v553
  %v601 = vpack.c.b16 %v556, %v555
  %v602 = vpack.c.b16 %v558, %v557
  %v603 = vpack.c.b16 %v560, %v559
  %v604 = vpack.c.b16 %v562, %v561
  %v605 = vpack.c.b16 %v564, %v563
  %v606 = vpack.c.b16 %v566, %v565
  %v607 = vpack.c.b16 %v568, %v567
  %v608 = vpack.c.b16 %v570, %v569
  %v609 = vpack.c.b16 %v572, %v571
  %v610 = vpack.c.b16 %v574, %v573
  %vm647 = vcmask 523264
  %v649 = vsel %vm647, %v363, 0
  %v652 = vsel %vm647, %v368, 0
  %v655 = vsel %vm647, %v373, 0
  %v658 = vsel %vm647, %v378, 0
  %v661 = vsel %vm647, %v383, 0
  %v664 = vsel %vm647, %v388, 0
  %v667 = vsel %vm647, %v393, 0
  %v670 = vsel %vm647, %v398, 0
  %672 = vmatpush.bf16.msra.mxu0 %v582
  %673 = vmatpush.bf16.msra.mxu0 %v581
  %674 = vmatpush.bf16.msra.mxu0 %v580
  %675 = vmatpush.bf16.msra.mxu0 %v579
  %676 = vmatpush.bf16.msra.mxu0 %v578
  %677 = vmatpush.bf16.msra.mxu0 %v577
  %678 = vmatpush.bf16.msra.mxu0 %v576
  %679 = vmatpush.bf16.msra.mxu0 %v575
  %680 = vmatmul.bf16.gmra.mxu0 %v359
  %v681 = vpop.f32.mrf.mxu0
  %v682 = vadd.f32 %v154, %v681
  %v683 = vpop.f32.mrf.mxu0
  %v684 = vadd.f32 %v159, %v683
  %685 = vmatmul.bf16.gmra.mxu0 %v364
  %v686 = vpop.f32.mrf.mxu0
  %v687 = vadd.f32 %v164, %v686
  %v688 = vpop.f32.mrf.mxu0
  %v689 = vadd.f32 %v169, %v688
  %690 = vmatmul.bf16.gmra.mxu0 %v369
  %v691 = vpop.f32.mrf.mxu0
  %v692 = vadd.f32 %v174, %v691
  %v693 = vpop.f32.mrf.mxu0
  %v694 = vadd.f32 %v179, %v693
  %695 = vmatmul.bf16.gmra.mxu0 %v374
  %v696 = vpop.f32.mrf.mxu0
  %v697 = vadd.f32 %v184, %v696
  %v698 = vpop.f32.mrf.mxu0
  %v699 = vadd.f32 %v189, %v698
  %700 = vmatmul.bf16.gmra.mxu0 %v379
  %v701 = vpop.f32.mrf.mxu0
  %v702 = vadd.f32 %v194, %v701
  %v703 = vpop.f32.mrf.mxu0
  %v704 = vadd.f32 %v199, %v703
  %705 = vmatmul.bf16.gmra.mxu0 %v384
  %v706 = vpop.f32.mrf.mxu0
  %v707 = vadd.f32 %v204, %v706
  %v708 = vpop.f32.mrf.mxu0
  %v709 = vadd.f32 %v209, %v708
  %710 = vmatmul.bf16.gmra.mxu0 %v389
  %v711 = vpop.f32.mrf.mxu0
  %v712 = vadd.f32 %v214, %v711
  %v713 = vpop.f32.mrf.mxu0
  %v714 = vadd.f32 %v219, %v713
  %715 = vmatmul.bf16.gmra.mxu0 %v394
  %v716 = vpop.f32.mrf.mxu0
  %v717 = vadd.f32 %v224, %v716
  %v718 = vpop.f32.mrf.mxu0
  %v719 = vadd.f32 %v229, %v718
  %720 = vdwg.mxu0
  %721 = vmatpush.bf16.msra.mxu0 %v590
  %722 = vmatpush.bf16.msra.mxu0 %v589
  %723 = vmatpush.bf16.msra.mxu0 %v588
  %724 = vmatpush.bf16.msra.mxu0 %v587
  %725 = vmatpush.bf16.msra.mxu0 %v586
  %726 = vmatpush.bf16.msra.mxu0 %v585
  %727 = vmatpush.bf16.msra.mxu0 %v584
  %728 = vmatpush.bf16.msra.mxu0 %v583
  %729 = vmatmul.bf16.gmra.mxu0 %v360
  %v730 = vpop.f32.mrf.mxu0
  %v731 = vadd.f32 %v682, %v730
  %v732 = vpop.f32.mrf.mxu0
  %v733 = vadd.f32 %v684, %v732
  %734 = vmatmul.bf16.gmra.mxu0 %v365
  %v735 = vpop.f32.mrf.mxu0
  %v736 = vadd.f32 %v687, %v735
  %v737 = vpop.f32.mrf.mxu0
  %v738 = vadd.f32 %v689, %v737
  %739 = vmatmul.bf16.gmra.mxu0 %v370
  %v740 = vpop.f32.mrf.mxu0
  %v741 = vadd.f32 %v692, %v740
  %v742 = vpop.f32.mrf.mxu0
  %v743 = vadd.f32 %v694, %v742
  %744 = vmatmul.bf16.gmra.mxu0 %v375
  %v745 = vpop.f32.mrf.mxu0
  %v746 = vadd.f32 %v697, %v745
  %v747 = vpop.f32.mrf.mxu0
  %v748 = vadd.f32 %v699, %v747
  %749 = vmatmul.bf16.gmra.mxu0 %v380
  %v750 = vpop.f32.mrf.mxu0
  %v751 = vadd.f32 %v702, %v750
  %v752 = vpop.f32.mrf.mxu0
  %v753 = vadd.f32 %v704, %v752
  %754 = vmatmul.bf16.gmra.mxu0 %v385
  %v755 = vpop.f32.mrf.mxu0
  %v756 = vadd.f32 %v707, %v755
  %v757 = vpop.f32.mrf.mxu0
  %v758 = vadd.f32 %v709, %v757
  %759 = vmatmul.bf16.gmra.mxu0 %v390
  %v760 = vpop.f32.mrf.mxu0
  %v761 = vadd.f32 %v712, %v760
  %v762 = vpop.f32.mrf.mxu0
  %v763 = vadd.f32 %v714, %v762
  %764 = vmatmul.bf16.gmra.mxu0 %v395
  %v765 = vpop.f32.mrf.mxu0
  %v766 = vadd.f32 %v717, %v765
  %v767 = vpop.f32.mrf.mxu0
  %v768 = vadd.f32 %v719, %v767
  %769 = vdwg.mxu0
  %770 = vmatpush.bf16.msra.mxu0 %v598
  %771 = vmatpush.bf16.msra.mxu0 %v597
  %772 = vmatpush.bf16.msra.mxu0 %v596
  %773 = vmatpush.bf16.msra.mxu0 %v595
  %774 = vmatpush.bf16.msra.mxu0 %v594
  %775 = vmatpush.bf16.msra.mxu0 %v593
  %776 = vmatpush.bf16.msra.mxu0 %v592
  %777 = vmatpush.bf16.msra.mxu0 %v591
  %778 = vmatmul.bf16.gmra.mxu0 %v361
  %v779 = vpop.f32.mrf.mxu0
  %v780 = vadd.f32 %v731, %v779
  %v781 = vpop.f32.mrf.mxu0
  %v782 = vadd.f32 %v733, %v781
  %783 = vmatmul.bf16.gmra.mxu0 %v366
  %v784 = vpop.f32.mrf.mxu0
  %v785 = vadd.f32 %v736, %v784
  %v786 = vpop.f32.mrf.mxu0
  %v787 = vadd.f32 %v738, %v786
  %788 = vmatmul.bf16.gmra.mxu0 %v371
  %v789 = vpop.f32.mrf.mxu0
  %v790 = vadd.f32 %v741, %v789
  %v791 = vpop.f32.mrf.mxu0
  %v792 = vadd.f32 %v743, %v791
  %793 = vmatmul.bf16.gmra.mxu0 %v376
  %v794 = vpop.f32.mrf.mxu0
  %v795 = vadd.f32 %v746, %v794
  %v796 = vpop.f32.mrf.mxu0
  %v797 = vadd.f32 %v748, %v796
  %798 = vmatmul.bf16.gmra.mxu0 %v381
  %v799 = vpop.f32.mrf.mxu0
  %v800 = vadd.f32 %v751, %v799
  %v801 = vpop.f32.mrf.mxu0
  %v802 = vadd.f32 %v753, %v801
  %803 = vmatmul.bf16.gmra.mxu0 %v386
  %v804 = vpop.f32.mrf.mxu0
  %v805 = vadd.f32 %v756, %v804
  %v806 = vpop.f32.mrf.mxu0
  %v807 = vadd.f32 %v758, %v806
  %808 = vmatmul.bf16.gmra.mxu0 %v391
  %v809 = vpop.f32.mrf.mxu0
  %v810 = vadd.f32 %v761, %v809
  %v811 = vpop.f32.mrf.mxu0
  %v812 = vadd.f32 %v763, %v811
  %813 = vmatmul.bf16.gmra.mxu0 %v396
  %v814 = vpop.f32.mrf.mxu0
  %v815 = vadd.f32 %v766, %v814
  %v816 = vpop.f32.mrf.mxu0
  %v817 = vadd.f32 %v768, %v816
  %818 = vdwg.mxu0
  %819 = vmatpush.bf16.msra.mxu0 %v606
  %820 = vmatpush.bf16.msra.mxu0 %v605
  %821 = vmatpush.bf16.msra.mxu0 %v604
  %822 = vmatpush.bf16.msra.mxu0 %v603
  %823 = vmatpush.bf16.msra.mxu0 %v602
  %824 = vmatpush.bf16.msra.mxu0 %v601
  %825 = vmatpush.bf16.msra.mxu0 %v600
  %826 = vmatpush.bf16.msra.mxu0 %v599
  %827 = vmatmul.bf16.gmra.mxu0 %v362
  %v828 = vpop.f32.mrf.mxu0
  %v829 = vadd.f32 %v780, %v828
  %v830 = vpop.f32.mrf.mxu0
  %v831 = vadd.f32 %v782, %v830
  %832 = vmatmul.bf16.gmra.mxu0 %v367
  %v833 = vpop.f32.mrf.mxu0
  %v834 = vadd.f32 %v785, %v833
  %v835 = vpop.f32.mrf.mxu0
  %v836 = vadd.f32 %v787, %v835
  %837 = vmatmul.bf16.gmra.mxu0 %v372
  %v838 = vpop.f32.mrf.mxu0
  %v839 = vadd.f32 %v790, %v838
  %v840 = vpop.f32.mrf.mxu0
  %v841 = vadd.f32 %v792, %v840
  %842 = vmatmul.bf16.gmra.mxu0 %v377
  %v843 = vpop.f32.mrf.mxu0
  %v844 = vadd.f32 %v795, %v843
  %v845 = vpop.f32.mrf.mxu0
  %v846 = vadd.f32 %v797, %v845
  %847 = vmatmul.bf16.gmra.mxu0 %v382
  %v848 = vpop.f32.mrf.mxu0
  %v849 = vadd.f32 %v800, %v848
  %v850 = vpop.f32.mrf.mxu0
  %v851 = vadd.f32 %v802, %v850
  %852 = vmatmul.bf16.gmra.mxu0 %v387
  %v853 = vpop.f32.mrf.mxu0
  %v854 = vadd.f32 %v805, %v853
  %v855 = vpop.f32.mrf.mxu0
  %v856 = vadd.f32 %v807, %v855
  %857 = vmatmul.bf16.gmra.mxu0 %v392
  %v858 = vpop.f32.mrf.mxu0
  %v859 = vadd.f32 %v810, %v858
  %v860 = vpop.f32.mrf.mxu0
  %v861 = vadd.f32 %v812, %v860
  %862 = vmatmul.bf16.gmra.mxu0 %v397
  %v863 = vpop.f32.mrf.mxu0
  %v864 = vadd.f32 %v815, %v863
  %v865 = vpop.f32.mrf.mxu0
  %v866 = vadd.f32 %v817, %v865
  %867 = vdwg.mxu0
  %868 = vmatpush.bf16.msra.mxu0 0
  %869 = vmatpush.bf16.msra.mxu0 0
  %870 = vmatpush.bf16.msra.mxu0 0
  %871 = vmatpush.bf16.msra.mxu0 0
  %872 = vmatpush.bf16.msra.mxu0 %v610
  %873 = vmatpush.bf16.msra.mxu0 %v609
  %874 = vmatpush.bf16.msra.mxu0 %v608
  %875 = vmatpush.bf16.msra.mxu0 %v607
  %876 = vmatmul.bf16.gmra.mxu0 %v649
  %v877 = vpop.f32.mrf.mxu0
  %v878 = vadd.f32 %v829, %v877
  %v879 = vpop.f32.mrf.mxu0
  %v880 = vadd.f32 %v831, %v879
  %881 = vmatmul.bf16.gmra.mxu0 %v652
  %v882 = vpop.f32.mrf.mxu0
  %v883 = vadd.f32 %v834, %v882
  %v884 = vpop.f32.mrf.mxu0
  %v885 = vadd.f32 %v836, %v884
  %886 = vmatmul.bf16.gmra.mxu0 %v655
  %v887 = vpop.f32.mrf.mxu0
  %v888 = vadd.f32 %v839, %v887
  %v889 = vpop.f32.mrf.mxu0
  %v890 = vadd.f32 %v841, %v889
  %891 = vmatmul.bf16.gmra.mxu0 %v658
  %v892 = vpop.f32.mrf.mxu0
  %v893 = vadd.f32 %v844, %v892
  %v894 = vpop.f32.mrf.mxu0
  %v895 = vadd.f32 %v846, %v894
  %896 = vmatmul.bf16.gmra.mxu0 %v661
  %v897 = vpop.f32.mrf.mxu0
  %v898 = vadd.f32 %v849, %v897
  %v899 = vpop.f32.mrf.mxu0
  %v900 = vadd.f32 %v851, %v899
  %901 = vmatmul.bf16.gmra.mxu0 %v664
  %v902 = vpop.f32.mrf.mxu0
  %v903 = vadd.f32 %v854, %v902
  %v904 = vpop.f32.mrf.mxu0
  %v905 = vadd.f32 %v856, %v904
  %906 = vmatmul.bf16.gmra.mxu0 %v667
  %v907 = vpop.f32.mrf.mxu0
  %v908 = vadd.f32 %v859, %v907
  %v909 = vpop.f32.mrf.mxu0
  %v910 = vadd.f32 %v861, %v909
  %911 = vmatmul.bf16.gmra.mxu0 %v670
  %v912 = vpop.f32.mrf.mxu0
  %v913 = vadd.f32 %v864, %v912
  %v914 = vpop.f32.mrf.mxu0
  %v915 = vadd.f32 %v866, %v914
  %916 = vdwg.mxu0
  %vm917 = vcmp.ge.f32.partialorder %v878, 0.0
  %vm918 = vcmp.ge.f32.partialorder %v880, 0.0
  %vm919 = vcmp.ge.f32.partialorder %v883, 0.0
  %vm920 = vcmp.ge.f32.partialorder %v885, 0.0
  %vm921 = vcmp.ge.f32.partialorder %v888, 0.0
  %vm922 = vcmp.ge.f32.partialorder %v890, 0.0
  %vm923 = vcmp.ge.f32.partialorder %v893, 0.0
  %vm924 = vcmp.ge.f32.partialorder %v895, 0.0
  %vm925 = vcmp.ge.f32.partialorder %v898, 0.0
  %vm926 = vcmp.ge.f32.partialorder %v900, 0.0
  %vm927 = vcmp.ge.f32.partialorder %v903, 0.0
  %vm928 = vcmp.ge.f32.partialorder %v905, 0.0
  %vm929 = vcmp.ge.f32.partialorder %v908, 0.0
  %vm930 = vcmp.ge.f32.partialorder %v910, 0.0
  %vm931 = vcmp.ge.f32.partialorder %v913, 0.0
  %vm932 = vcmp.ge.f32.partialorder %v915, 0.0
  %v933 = vmul.f32 %v878, 0.2
  %v934 = vmul.f32 %v880, 0.2
  %v935 = vmul.f32 %v883, 0.2
  %v936 = vmul.f32 %v885, 0.2
  %v937 = vmul.f32 %v888, 0.2
  %v938 = vmul.f32 %v890, 0.2
  %v939 = vmul.f32 %v893, 0.2
  %v940 = vmul.f32 %v895, 0.2
  %v941 = vmul.f32 %v898, 0.2
  %v942 = vmul.f32 %v900, 0.2
  %v943 = vmul.f32 %v903, 0.2
  %v944 = vmul.f32 %v905, 0.2
  %v945 = vmul.f32 %v908, 0.2
  %v946 = vmul.f32 %v910, 0.2
  %v947 = vmul.f32 %v913, 0.2
  %v948 = vmul.f32 %v915, 0.2
  %v949 = vsel %vm917, %v878, %v933
  %v950 = vsel %vm918, %v880, %v934
  %v951 = vsel %vm919, %v883, %v935
  %v952 = vsel %vm920, %v885, %v936
  %v953 = vsel %vm921, %v888, %v937
  %v954 = vsel %vm922, %v890, %v938
  %v955 = vsel %vm923, %v893, %v939
  %v956 = vsel %vm924, %v895, %v940
  %v957 = vsel %vm925, %v898, %v941
  %v958 = vsel %vm926, %v900, %v942
  %v959 = vsel %vm927, %v903, %v943
  %v960 = vsel %vm928, %v905, %v944
  %v961 = vsel %vm929, %v908, %v945
  %v962 = vsel %vm930, %v910, %v946
  %v963 = vsel %vm931, %v913, %v947
  %v964 = vsel %vm932, %v915, %v948
  %v965 = vpack.c.bf16 %v949, %v949
  %v966 = vpack.c.bf16 %v950, %v950
  %v967 = vpack.c.bf16 %v951, %v951
  %v968 = vpack.c.bf16 %v952, %v952
  %v969 = vpack.c.bf16 %v953, %v953
  %v970 = vpack.c.bf16 %v954, %v954
  %v971 = vpack.c.bf16 %v955, %v955
  %v972 = vpack.c.bf16 %v956, %v956
  %v973 = vpack.c.bf16 %v957, %v957
  %v974 = vpack.c.bf16 %v958, %v958
  %v975 = vpack.c.bf16 %v959, %v959
  %v976 = vpack.c.bf16 %v960, %v960
  %v977 = vpack.c.bf16 %v961, %v961
  %v978 = vpack.c.bf16 %v962, %v962
  %v979 = vpack.c.bf16 %v963, %v963
  %v980 = vpack.c.bf16 %v964, %v964
  %vm981 = vcmask 257024
  %982 = vst.msk [vmem:[%s3] sm:$0xf] %vm981, %v965
  %983 = vst.msk [vmem:[%s3 + $0x4] sm:$0xf] %vm981, %v966
  %984 = vst.msk [vmem:[%s3 + $0x8] sm:$0xf] %vm981, %v967
  %985 = vst.msk [vmem:[%s3 + $0xc] sm:$0xf] %vm981, %v968
  %986 = vst.msk [vmem:[%s3 + $0x10] sm:$0xf] %vm981, %v969
  %987 = vst.msk [vmem:[%s3 + $0x14] sm:$0xf] %vm981, %v970
  %988 = vst.msk [vmem:[%s3 + $0x18] sm:$0xf] %vm981, %v971
  %989 = vst.msk [vmem:[%s3 + $0x1c] sm:$0xf] %vm981, %v972
  %990 = vst.msk [vmem:[%s3 + $0x20] sm:$0xf] %vm981, %v973
  %991 = vst.msk [vmem:[%s3 + $0x24] sm:$0xf] %vm981, %v974
  %992 = vst.msk [vmem:[%s3 + $0x28] sm:$0xf] %vm981, %v975
  %993 = vst.msk [vmem:[%s3 + $0x2c] sm:$0xf] %vm981, %v976
  %994 = vst.msk [vmem:[%s3 + $0x30] sm:$0xf] %vm981, %v977
  %995 = vst.msk [vmem:[%s3 + $0x34] sm:$0xf] %vm981, %v978
  %996 = vst.msk [vmem:[%s3 + $0x38] sm:$0xf] %vm981, %v979
  %997 = vst.msk [vmem:[%s3 + $0x3c] sm:$0xf] %vm981, %v980
  // Predicated region
  $region14: #{generator_forward.4} parent=0 // pred_check
    _
  $region15: #{generator_forward.4} parent=0 // pred_check_branch
    %999 = sbr.rel (0) target = $region17
  $region16: #{generator_forward.4} parent=0 // pred_region
    _
  $region17: #{generator_forward.4} parent=0 // pred_fallthru
    _
  // Predicated region
  $region18: #{generator_forward.4} parent=0 // pred_check
    _
  $region19: #{generator_forward.4} parent=0 // pred_check_branch
    %1001 = sbr.rel (0) target = $region21
  $region20: #{generator_forward.4} parent=0 // pred_region
    _
  $region21: #{generator_forward.4} parent=0 // pred_fallthru
    _

// kernel: generator_forward.5
$region0: #{generator_forward.5}
  #allocation0 [shape = 'u32[]', space=smem, size = 0x4, offset = 0x4, fixed_abs, tag = 'smem constant byte address 0x4 - core index']
  #allocation1 [shape = 'u32[72,128]{1,0:T(1,128)}', space=vmem, size = 0x9000, scoped, tag = 'internal scratch']
  %s0 = inlined_call_operand.vmem [shape: bf16[64,288], index: 0, kind: input, shape index: {}]
  %s1 = inlined_call_operand.vmem [shape: bf16[288,128], index: 1, kind: input, shape index: {}]
  %s2 = inlined_call_operand.vmem [shape: f32[64,1], index: 2, kind: input, shape index: {}]
  %s3 = inlined_call_operand.vmem [shape: bf16[64,128], index: 3, kind: output, shape index: {}]
  %s4 = sld [smem:[#allocation0]]
  $region22: #{generator_forward.5} parent=0
    _
  %s6 = ssub.s32 1, %s4
  %s7 = scalar_select 0, %s6, %s4
  // Predicated region
  $region2: #{generator_forward.5} parent=0 // pred_check
    _
  $region3: #{generator_forward.5} parent=0 // pred_check_branch
    %9 = sbr.rel (0) target = $region5
  $region4: #{generator_forward.5} parent=0 // pred_region
    _
  $region5: #{generator_forward.5} parent=0 // pred_fallthru
    _
  // Predicated region
  $region6: #{generator_forward.5} parent=0 // pred_check
    _
  $region7: #{generator_forward.5} parent=0 // pred_check_branch
    %11 = sbr.rel (0) target = $region9
  $region8: #{generator_forward.5} parent=0 // pred_region
    _
  $region9: #{generator_forward.5} parent=0 // pred_fallthru
    _
  // Predicated region
  $region10: #{generator_forward.5} parent=0 // pred_check
    _
  $region11: #{generator_forward.5} parent=0 // pred_check_branch
    %13 = sbr.rel (0) target = $region13
  $region12: #{generator_forward.5} parent=0 // pred_region
    _
  $region13: #{generator_forward.5} parent=0 // pred_fallthru
    _
  %v15 = vld [vmem:[%s0] sm:$0xff]
  %v16 = vld [vmem:[%s0 + $0x8] sm:$0xf]
  %v17 = vld [vmem:[%s0 + $0xc] sm:$0xff]
  %v18 = vld [vmem:[%s0 + $0x14] sm:$0xf]
  %v19 = vld [vmem:[%s0 + $0x18] sm:$0xff]
  %v20 = vld [vmem:[%s0 + $0x20] sm:$0xf]
  %v21 = vld [vmem:[%s0 + $0x24] sm:$0xff]
  %v22 = vld [vmem:[%s0 + $0x2c] sm:$0xf]
  %v23 = vld [vmem:[%s0 + $0x30] sm:$0xff]
  %v24 = vld [vmem:[%s0 + $0x38] sm:$0xf]
  %v25 = vld [vmem:[%s0 + $0x3c] sm:$0xff]
  %v26 = vld [vmem:[%s0 + $0x44] sm:$0xf]
  %v27 = vld [vmem:[%s0 + $0x48] sm:$0xff]
  %v28 = vld [vmem:[%s0 + $0x50] sm:$0xf]
  %v29 = vld [vmem:[%s0 + $0x54] sm:$0xff]
  %v30 = vld [vmem:[%s0 + $0x5c] sm:$0xf]
  %v31 = vld [vmem:[%s1] sm:$0xf]
  %v32 = vld [vmem:[%s1 + $0x4] sm:$0xf]
  %v33 = vld [vmem:[%s1 + $0x8] sm:$0xf]
  %v34 = vld [vmem:[%s1 + $0xc] sm:$0xf]
  %v35 = vld [vmem:[%s1 + $0x10] sm:$0xf]
  %v36 = vld [vmem:[%s1 + $0x14] sm:$0xf]
  %v37 = vld [vmem:[%s1 + $0x18] sm:$0xf]
  %v38 = vld [vmem:[%s1 + $0x1c] sm:$0xf]
  %v39 = vld [vmem:[%s1 + $0x20] sm:$0xf]
  %v40 = vld [vmem:[%s1 + $0x24] sm:$0xf]
  %v41 = vld [vmem:[%s1 + $0x28] sm:$0xf]
  %v42 = vld [vmem:[%s1 + $0x2c] sm:$0xf]
  %v43 = vld [vmem:[%s1 + $0x30] sm:$0xf]
  %v44 = vld [vmem:[%s1 + $0x34] sm:$0xf]
  %v45 = vld [vmem:[%s1 + $0x38] sm:$0xf]
  %v46 = vld [vmem:[%s1 + $0x3c] sm:$0xf]
  %v47 = vld [vmem:[%s1 + $0x40] sm:$0xf]
  %v48 = vld [vmem:[%s1 + $0x44] sm:$0xf]
  %v49 = vld [vmem:[%s1 + $0x48] sm:$0xf]
  %v50 = vld [vmem:[%s1 + $0x4c] sm:$0xf]
  %v51 = vld [vmem:[%s1 + $0x50] sm:$0xf]
  %v52 = vld [vmem:[%s1 + $0x54] sm:$0xf]
  %v53 = vld [vmem:[%s1 + $0x58] sm:$0xf]
  %v54 = vld [vmem:[%s1 + $0x5c] sm:$0xf]
  %v55 = vld [vmem:[%s1 + $0x60] sm:$0xf]
  %v56 = vld [vmem:[%s1 + $0x64] sm:$0xf]
  %v57 = vld [vmem:[%s1 + $0x68] sm:$0xf]
  %v58 = vld [vmem:[%s1 + $0x6c] sm:$0xf]
  %v59 = vld [vmem:[%s1 + $0x70] sm:$0xf]
  %v60 = vld [vmem:[%s1 + $0x74] sm:$0xf]
  %v61 = vld [vmem:[%s1 + $0x78] sm:$0xf]
  %v62 = vld [vmem:[%s1 + $0x7c] sm:$0xf]
  %v63 = vld [vmem:[%s1 + $0x80] sm:$0xf]
  %v64 = vld [vmem:[%s1 + $0x84] sm:$0xf]
  %v65 = vld [vmem:[%s1 + $0x88] sm:$0xf]
  %v66 = vld [vmem:[%s1 + $0x8c] sm:$0xf]
  %v67 = vld [vmem:[%s2] sm:$0xff]
  %v68 = vld [vmem:[%s2 + $0x8] sm:$0xff]
  %v69 = vld [vmem:[%s2 + $0x10] sm:$0xff]
  %v70 = vld [vmem:[%s2 + $0x18] sm:$0xff]
  %v71 = vld [vmem:[%s2 + $0x20] sm:$0xff]
  %v72 = vld [vmem:[%s2 + $0x28] sm:$0xff]
  %v73 = vld [vmem:[%s2 + $0x30] sm:$0xff]
  %v74 = vld [vmem:[%s2 + $0x38] sm:$0xff]
  %76 = vset.pattern.permute.xlu0 0
  %77 = vperm.xlu0 %76, %v67
  %v78 = vpop.permute.xlu0 %77
  %81 = vset.pattern.permute.xlu0 0
  %82 = vperm.xlu0 %81, %v68
  %v83 = vpop.permute.xlu0 %82
  %86 = vset.pattern.permute.xlu0 0
  %87 = vperm.xlu0 %86, %v69
  %v88 = vpop.permute.xlu0 %87
  %91 = vset.pattern.permute.xlu0 0
  %92 = vperm.xlu0 %91, %v70
  %v93 = vpop.permute.xlu0 %92
  %96 = vset.pattern.permute.xlu0 0
  %97 = vperm.xlu0 %96, %v71
  %v98 = vpop.permute.xlu0 %97
  %101 = vset.pattern.permute.xlu0 0
  %102 = vperm.xlu0 %101, %v72
  %v103 = vpop.permute.xlu0 %102
  %106 = vset.pattern.permute.xlu0 0
  %107 = vperm.xlu0 %106, %v73
  %v108 = vpop.permute.xlu0 %107
  %111 = vset.pattern.permute.xlu0 0
  %112 = vperm.xlu0 %111, %v74
  %v113 = vpop.permute.xlu0 %112
  %v131 = vunpack.c.l.b16 %v15
  %v132 = vunpack.c.h.b16 %v15
  %v133 = vunpack.c.l.b16 %v16
  %v134 = vunpack.c.l.b16 %v17
  %v135 = vunpack.c.h.b16 %v17
  %v136 = vunpack.c.l.b16 %v18
  %v137 = vunpack.c.l.b16 %v19
  %v138 = vunpack.c.h.b16 %v19
  %v139 = vunpack.c.l.b16 %v20
  %v140 = vunpack.c.l.b16 %v21
  %v141 = vunpack.c.h.b16 %v21
  %v142 = vunpack.c.l.b16 %v22
  %v143 = vunpack.c.l.b16 %v23
  %v144 = vunpack.c.h.b16 %v23
  %v145 = vunpack.c.l.b16 %v24
  %v146 = vunpack.c.l.b16 %v25
  %v147 = vunpack.c.h.b16 %v25
  %v148 = vunpack.c.l.b16 %v26
  %v149 = vunpack.c.l.b16 %v27
  %v150 = vunpack.c.h.b16 %v27
  %v151 = vunpack.c.l.b16 %v28
  %v152 = vunpack.c.l.b16 %v29
  %v153 = vunpack.c.h.b16 %v29
  %v154 = vunpack.c.l.b16 %v30
  %v155 = vpack.c.b16 %v134, %v131
  %v156 = vpack.c.b16 %v135, %v132
  %v157 = vpack.c.b16 %v136, %v133
  %v158 = vpack.c.b16 %v140, %v137
  %v159 = vpack.c.b16 %v141, %v138
  %v160 = vpack.c.b16 %v142, %v139
  %v161 = vpack.c.b16 %v146, %v143
  %v162 = vpack.c.b16 %v147, %v144
  %v163 = vpack.c.b16 %v148, %v145
  %v164 = vpack.c.b16 %v152, %v149
  %v165 = vpack.c.b16 %v153, %v150
  %v166 = vpack.c.b16 %v154, %v151
  %v211 = vunpack.c.l.b16 %v31
  %v212 = vunpack.c.l.b16 %v32
  %v213 = vunpack.c.l.b16 %v33
  %v214 = vunpack.c.l.b16 %v34
  %v215 = vunpack.c.l.b16 %v35
  %v216 = vunpack.c.l.b16 %v36
  %v217 = vunpack.c.l.b16 %v37
  %v218 = vunpack.c.l.b16 %v38
  %v219 = vunpack.c.l.b16 %v39
  %v220 = vunpack.c.l.b16 %v40
  %v221 = vunpack.c.l.b16 %v41
  %v222 = vunpack.c.l.b16 %v42
  %v223 = vunpack.c.l.b16 %v43
  %v224 = vunpack.c.l.b16 %v44
  %v225 = vunpack.c.l.b16 %v45
  %v226 = vunpack.c.l.b16 %v46
  %v227 = vunpack.c.l.b16 %v47
  %v228 = vunpack.c.l.b16 %v48
  %v229 = vunpack.c.l.b16 %v49
  %v230 = vunpack.c.l.b16 %v50
  %v231 = vunpack.c.l.b16 %v51
  %v232 = vunpack.c.l.b16 %v52
  %v233 = vunpack.c.l.b16 %v53
  %v234 = vunpack.c.l.b16 %v54
  %v235 = vunpack.c.l.b16 %v55
  %v236 = vunpack.c.l.b16 %v56
  %v237 = vunpack.c.l.b16 %v57
  %v238 = vunpack.c.l.b16 %v58
  %v239 = vunpack.c.l.b16 %v59
  %v240 = vunpack.c.l.b16 %v60
  %v241 = vunpack.c.l.b16 %v61
  %v242 = vunpack.c.l.b16 %v62
  %v243 = vunpack.c.l.b16 %v63
  %v244 = vunpack.c.l.b16 %v64
  %v245 = vunpack.c.l.b16 %v65
  %v246 = vunpack.c.l.b16 %v66
  %v247 = vpack.c.b16 %v212, %v211
  %v248 = vpack.c.b16 %v214, %v213
  %v249 = vpack.c.b16 %v216, %v215
  %v250 = vpack.c.b16 %v218, %v217
  %v251 = vpack.c.b16 %v220, %v219
  %v252 = vpack.c.b16 %v222, %v221
  %v253 = vpack.c.b16 %v224, %v223
  %v254 = vpack.c.b16 %v226, %v225
  %v255 = vpack.c.b16 %v228, %v227
  %v256 = vpack.c.b16 %v230, %v229
  %v257 = vpack.c.b16 %v232, %v231
  %v258 = vpack.c.b16 %v234, %v233
  %v259 = vpack.c.b16 %v236, %v235
  %v260 = vpack.c.b16 %v238, %v237
  %v261 = vpack.c.b16 %v240, %v239
  %v262 = vpack.c.b16 %v242, %v241
  %v263 = vpack.c.b16 %v244, %v243
  %v264 = vpack.c.b16 %v246, %v245
  %vm283 = vcmask 261120
  %v285 = vsel %vm283, %v157, 0
  %v288 = vsel %vm283, %v160, 0
  %v291 = vsel %vm283, %v163, 0
  %v294 = vsel %vm283, %v166, 0
  %296 = vmatpush.bf16.msra.mxu0 %v254
  %297 = vmatpush.bf16.msra.mxu0 %v253
  %298 = vmatpush.bf16.msra.mxu0 %v252
  %299 = vmatpush.bf16.msra.mxu0 %v251
  %300 = vmatpush.bf16.msra.mxu0 %v250
  %301 = vmatpush.bf16.msra.mxu0 %v249
  %302 = vmatpush.bf16.msra.mxu0 %v248
  %303 = vmatpush.bf16.msra.mxu0 %v247
  %304 = vmatmul.bf16.gmra.mxu0 %v155
  %v305 = vpop.f32.mrf.mxu0
  %v306 = vadd.f32 %v78, %v305
  %v307 = vpop.f32.mrf.mxu0
  %v308 = vadd.f32 %v83, %v307
  %309 = vmatmul.bf16.gmra.mxu0 %v158
  %v310 = vpop.f32.mrf.mxu0
  %v311 = vadd.f32 %v88, %v310
  %v312 = vpop.f32.mrf.mxu0
  %v313 = vadd.f32 %v93, %v312
  %314 = vmatmul.bf16.gmra.mxu0 %v161
  %v315 = vpop.f32.mrf.mxu0
  %v316 = vadd.f32 %v98, %v315
  %v317 = vpop.f32.mrf.mxu0
  %v318 = vadd.f32 %v103, %v317
  %319 = vmatmul.bf16.gmra.mxu0 %v164
  %v320 = vpop.f32.mrf.mxu0
  %v321 = vadd.f32 %v108, %v320
  %v322 = vpop.f32.mrf.mxu0
  %v323 = vadd.f32 %v113, %v322
  %324 = vdwg.mxu0
  %325 = vmatpush.bf16.msra.mxu0 %v262
  %326 = vmatpush.bf16.msra.mxu0 %v261
  %327 = vmatpush.bf16.msra.mxu0 %v260
  %328 = vmatpush.bf16.msra.mxu0 %v259
  %329 = vmatpush.bf16.msra.mxu0 %v258
  %330 = vmatpush.bf16.msra.mxu0 %v257
  %331 = vmatpush.bf16.msra.mxu0 %v256
  %332 = vmatpush.bf16.msra.mxu0 %v255
  %333 = vmatmul.bf16.gmra.mxu0 %v156
  %v334 = vpop.f32.mrf.mxu0
  %v335 = vadd.f32 %v306, %v334
  %v336 = vpop.f32.mrf.mxu0
  %v337 = vadd.f32 %v308, %v336
  %338 = vmatmul.bf16.gmra.mxu0 %v159
  %v339 = vpop.f32.mrf.mxu0
  %v340 = vadd.f32 %v311, %v339
  %v341 = vpop.f32.mrf.mxu0
  %v342 = vadd.f32 %v313, %v341
  %343 = vmatmul.bf16.gmra.mxu0 %v162
  %v344 = vpop.f32.mrf.mxu0
  %v345 = vadd.f32 %v316, %v344
  %v346 = vpop.f32.mrf.mxu0
  %v347 = vadd.f32 %v318, %v346
  %348 = vmatmul.bf16.gmra.mxu0 %v165
  %v349 = vpop.f32.mrf.mxu0
  %v350 = vadd.f32 %v321, %v349
  %v351 = vpop.f32.mrf.mxu0
  %v352 = vadd.f32 %v323, %v351
  %353 = vdwg.mxu0
  %354 = vmatpush.bf16.msra.mxu0 0
  %355 = vmatpush.bf16.msra.mxu0 0
  %356 = vmatpush.bf16.msra.mxu0 0
  %357 = vmatpush.bf16.msra.mxu0 0
  %358 = vmatpush.bf16.msra.mxu0 0
  %359 = vmatpush.bf16.msra.mxu0 0
  %360 = vmatpush.bf16.msra.mxu0 %v264
  %361 = vmatpush.bf16.msra.mxu0 %v263
  %362 = vmatmul.bf16.gmra.mxu0 %v285
  %v363 = vpop.f32.mrf.mxu0
  %v364 = vadd.f32 %v335, %v363
  %v365 = vpop.f32.mrf.mxu0
  %v366 = vadd.f32 %v337, %v365
  %367 = vmatmul.bf16.gmra.mxu0 %v288
  %v368 = vpop.f32.mrf.mxu0
  %v369 = vadd.f32 %v340, %v368
  %v370 = vpop.f32.mrf.mxu0
  %v371 = vadd.f32 %v342, %v370
  %372 = vmatmul.bf16.gmra.mxu0 %v291
  %v373 = vpop.f32.mrf.mxu0
  %v374 = vadd.f32 %v345, %v373
  %v375 = vpop.f32.mrf.mxu0
  %v376 = vadd.f32 %v347, %v375
  %377 = vmatmul.bf16.gmra.mxu0 %v294
  %v378 = vpop.f32.mrf.mxu0
  %v379 = vadd.f32 %v350, %v378
  %v380 = vpop.f32.mrf.mxu0
  %v381 = vadd.f32 %v352, %v380
  %382 = vdwg.mxu0
  %vm383 = vcmp.ge.f32.partialorder %v364, 0.0
  %vm384 = vcmp.ge.f32.partialorder %v366, 0.0
  %vm385 = vcmp.ge.f32.partialorder %v369, 0.0
  %vm386 = vcmp.ge.f32.partialorder %v371, 0.0
  %vm387 = vcmp.ge.f32.partialorder %v374, 0.0
  %vm388 = vcmp.ge.f32.partialorder %v376, 0.0
  %vm389 = vcmp.ge.f32.partialorder %v379, 0.0
  %vm390 = vcmp.ge.f32.partialorder %v381, 0.0
  %v391 = vmul.f32 %v364, 0.2
  %v392 = vmul.f32 %v366, 0.2
  %v393 = vmul.f32 %v369, 0.2
  %v394 = vmul.f32 %v371, 0.2
  %v395 = vmul.f32 %v374, 0.2
  %v396 = vmul.f32 %v376, 0.2
  %v397 = vmul.f32 %v379, 0.2
  %v398 = vmul.f32 %v381, 0.2
  %v399 = vsel %vm383, %v364, %v391
  %v400 = vsel %vm384, %v366, %v392
  %v401 = vsel %vm385, %v369, %v393
  %v402 = vsel %vm386, %v371, %v394
  %v403 = vsel %vm387, %v374, %v395
  %v404 = vsel %vm388, %v376, %v396
  %v405 = vsel %vm389, %v379, %v397
  %v406 = vsel %vm390, %v381, %v398
  %v407 = vpack.c.bf16 %v399, %v399
  %v408 = vpack.c.bf16 %v400, %v400
  %v409 = vpack.c.bf16 %v401, %v401
  %v410 = vpack.c.bf16 %v402, %v402
  %v411 = vpack.c.bf16 %v403, %v403
  %v412 = vpack.c.bf16 %v404, %v404
  %v413 = vpack.c.bf16 %v405, %v405
  %v414 = vpack.c.bf16 %v406, %v406
  %415 = vst [vmem:[%s3] sm:$0xf] %v407
  %416 = vst [vmem:[%s3 + $0x4] sm:$0xf] %v408
  %417 = vst [vmem:[%s3 + $0x8] sm:$0xf] %v409
  %418 = vst [vmem:[%s3 + $0xc] sm:$0xf] %v410
  %419 = vst [vmem:[%s3 + $0x10] sm:$0xf] %v411
  %420 = vst [vmem:[%s3 + $0x14] sm:$0xf] %v412
  %421 = vst [vmem:[%s3 + $0x18] sm:$0xf] %v413
  %422 = vst [vmem:[%s3 + $0x1c] sm:$0xf] %v414
  // Predicated region
  $region14: #{generator_forward.5} parent=0 // pred_check
    _
  $region15: #{generator_forward.5} parent=0 // pred_check_branch
    %424 = sbr.rel (0) target = $region17
  $region16: #{generator_forward.5} parent=0 // pred_region
    _
  $region17: #{generator_forward.5} parent=0 // pred_fallthru
    _
  // Predicated region
  $region18: #{generator_forward.5} parent=0 // pred_check
    _
  $region19: #{generator_forward.5} parent=0 // pred_check_branch
    %426 = sbr.rel (0) target = $region21
  $region20: #{generator_forward.5} parent=0 // pred_region
    _
  $region21: #{generator_forward.5} parent=0 // pred_fallthru
    _

// kernel: generator_forward.6
$region0: #{generator_forward.6}
  #allocation0 [shape = 'u32[]', space=smem, size = 0x4, offset = 0x4, fixed_abs, tag = 'smem constant byte address 0x4 - core index']
  #allocation1 [shape = 'u32[72,128]{1,0:T(1,128)}', space=vmem, size = 0x9000, scoped, tag = 'internal scratch']
  %s0 = inlined_call_operand.vmem [shape: bf16[32,144], index: 0, kind: input, shape index: {}]
  %s1 = inlined_call_operand.vmem [shape: bf16[144,512], index: 1, kind: input, shape index: {}]
  %s2 = inlined_call_operand.vmem [shape: f32[32,1], index: 2, kind: input, shape index: {}]
  %s3 = inlined_call_operand.vmem [shape: bf16[32,512], index: 3, kind: output, shape index: {}]
  %s4 = sld [smem:[#allocation0]]
  $region22: #{generator_forward.6} parent=0
    _
  %s6 = ssub.s32 1, %s4
  %s7 = scalar_select 0, %s6, %s4
  // Predicated region
  $region2: #{generator_forward.6} parent=0 // pred_check
    _
  $region3: #{generator_forward.6} parent=0 // pred_check_branch
    %9 = sbr.rel (0) target = $region5
  $region4: #{generator_forward.6} parent=0 // pred_region
    _
  $region5: #{generator_forward.6} parent=0 // pred_fallthru
    _
  // Predicated region
  $region6: #{generator_forward.6} parent=0 // pred_check
    _
  $region7: #{generator_forward.6} parent=0 // pred_check_branch
    %11 = sbr.rel (0) target = $region9
  $region8: #{generator_forward.6} parent=0 // pred_region
    _
  $region9: #{generator_forward.6} parent=0 // pred_fallthru
    _
  // Predicated region
  $region10: #{generator_forward.6} parent=0 // pred_check
    _
  $region11: #{generator_forward.6} parent=0 // pred_check_branch
    %13 = sbr.rel (0) target = $region13
  $region12: #{generator_forward.6} parent=0 // pred_region
    _
  $region13: #{generator_forward.6} parent=0 // pred_fallthru
    _
  %v15 = vld [vmem:[%s0] sm:$0xff]
  %v16 = vld [vmem:[%s0 + $0x8] sm:$0xff]
  %v17 = vld [vmem:[%s0 + $0x10] sm:$0xff]
  %v18 = vld [vmem:[%s0 + $0x18] sm:$0xff]
  %v19 = vld [vmem:[%s1] sm:$0xff]
  %v20 = vld [vmem:[%s1 + $0x8] sm:$0xff]
  %v21 = vld [vmem:[%s1 + $0x10] sm:$0xff]
  %v22 = vld [vmem:[%s1 + $0x18] sm:$0xff]
  %v23 = vld [vmem:[%s1 + $0x20] sm:$0xff]
  %v24 = vld [vmem:[%s1 + $0x28] sm:$0xff]
  %v25 = vld [vmem:[%s1 + $0x30] sm:$0xff]
  %v26 = vld [vmem:[%s1 + $0x38] sm:$0xff]
  %v27 = vld [vmem:[%s1 + $0x40] sm:$0xff]
  %v28 = vld [vmem:[%s1 + $0x48] sm:$0xff]
  %v29 = vld [vmem:[%s1 + $0x50] sm:$0xff]
  %v30 = vld [vmem:[%s1 + $0x58] sm:$0xff]
  %v31 = vld [vmem:[%s1 + $0x60] sm:$0xff]
  %v32 = vld [vmem:[%s1 + $0x68] sm:$0xff]
  %v33 = vld [vmem:[%s1 + $0x70] sm:$0xff]
  %v34 = vld [vmem:[%s1 + $0x78] sm:$0xff]
  %v35 = vld [vmem:[%s1 + $0x80] sm:$0xff]
  %v36 = vld [vmem:[%s1 + $0x88] sm:$0xff]
  %v37 = vld [vmem:[%s1 + $0x90] sm:$0xff]
  %v38 = vld [vmem:[%s1 + $0x98] sm:$0xff]
  %v39 = vld [vmem:[%s1 + $0xa0] sm:$0xff]
  %v40 = vld [vmem:[%s1 + $0xa8] sm:$0xff]
  %v41 = vld [vmem:[%s1 + $0xb0] sm:$0xff]
  %v42 = vld [vmem:[%s1 + $0xb8] sm:$0xff]
  %v43 = vld [vmem:[%s1 + $0xc0] sm:$0xff]
  %v44 = vld [vmem:[%s1 + $0xc8] sm:$0xff]
  %v45 = vld [vmem:[%s1 + $0xd0] sm:$0xff]
  %v46 = vld [vmem:[%s1 + $0xd8] sm:$0xff]
  %v47 = vld [vmem:[%s1 + $0xe0] sm:$0xff]
  %v48 = vld [vmem:[%s1 + $0xe8] sm:$0xff]
  %v49 = vld [vmem:[%s1 + $0xf0] sm:$0xff]
  %v50 = vld [vmem:[%s1 + $0xf8] sm:$0xff]
  %v51 = vld [vmem:[%s1 + $0x100] sm:$0xff]
  %v52 = vld [vmem:[%s1 + $0x108] sm:$0xff]
  %v53 = vld [vmem:[%s1 + $0x110] sm:$0xff]
  %v54 = vld [vmem:[%s1 + $0x118] sm:$0xff]
  %v55 = vld [vmem:[%s2] sm:$0xff]
  %v56 = vld [vmem:[%s2 + $0x8] sm:$0xff]
  %v57 = vld [vmem:[%s2 + $0x10] sm:$0xff]
  %v58 = vld [vmem:[%s2 + $0x18] sm:$0xff]
  %60 = vset.pattern.permute.xlu0 0
  %61 = vperm.xlu0 %60, %v55
  %v62 = vpop.permute.xlu0 %61
  %65 = vset.pattern.permute.xlu0 0
  %66 = vperm.xlu0 %65, %v56
  %v67 = vpop.permute.xlu0 %66
  %70 = vset.pattern.permute.xlu0 0
  %71 = vperm.xlu0 %70, %v57
  %v72 = vpop.permute.xlu0 %71
  %75 = vset.pattern.permute.xlu0 0
  %76 = vperm.xlu0 %75, %v58
  %v77 = vpop.permute.xlu0 %76
  %v83 = vunpack.c.l.b16 %v15
  %v84 = vunpack.c.h.b16 %v15
  %v85 = vunpack.c.l.b16 %v16
  %v86 = vunpack.c.h.b16 %v16
  %v87 = vunpack.c.l.b16 %v17
  %v88 = vunpack.c.h.b16 %v17
  %v89 = vunpack.c.l.b16 %v18
  %v90 = vunpack.c.h.b16 %v18
  %v91 = vpack.c.b16 %v85, %v83
  %v92 = vpack.c.b16 %v86, %v84
  %v93 = vpack.c.b16 %v89, %v87
  %v94 = vpack.c.b16 %v90, %v88
  %v133 = vunpack.c.l.b16 %v19
  %v134 = vunpack.c.h.b16 %v19
  %v135 = vunpack.c.l.b16 %v20
  %v136 = vunpack.c.h.b16 %v20
  %v137 = vunpack.c.l.b16 %v21
  %v138 = vunpack.c.h.b16 %v21
  %v139 = vunpack.c.l.b16 %v22
  %v140 = vunpack.c.h.b16 %v22
  %v141 = vunpack.c.l.b16 %v23
  %v142 = vunpack.c.h.b16 %v23
  %v143 = vunpack.c.l.b16 %v24
  %v144 = vunpack.c.h.b16 %v24
  %v145 = vunpack.c.l.b16 %v25
  %v146 = vunpack.c.h.b16 %v25
  %v147 = vunpack.c.l.b16 %v26
  %v148 = vunpack.c.h.b16 %v26
  %v149 = vunpack.c.l.b16 %v27
  %v150 = vunpack.c.h.b16 %v27
  %v151 = vunpack.c.l.b16 %v28
  %v152 = vunpack.c.h.b16 %v28
  %v153 = vunpack.c.l.b16 %v29
  %v154 = vunpack.c.h.b16 %v29
  %v155 = vunpack.c.l.b16 %v30
  %v156 = vunpack.c.h.b16 %v30
  %v157 = vunpack.c.l.b16 %v31
  %v158 = vunpack.c.h.b16 %v31
  %v159 = vunpack.c.l.b16 %v32
  %v160 = vunpack.c.h.b16 %v32
  %v161 = vunpack.c.l.b16 %v33
  %v162 = vunpack.c.h.b16 %v33
  %v163 = vunpack.c.l.b16 %v34
  %v164 = vunpack.c.h.b16 %v34
  %v165 = vunpack.c.l.b16 %v35
  %v166 = vunpack.c.h.b16 %v35
  %v167 = vunpack.c.l.b16 %v36
  %v168 = vunpack.c.h.b16 %v36
  %v169 = vunpack.c.l.b16 %v37
  %v170 = vunpack.c.h.b16 %v37
  %v171 = vunpack.c.l.b16 %v38
  %v172 = vunpack.c.h.b16 %v38
  %v173 = vunpack.c.l.b16 %v39
  %v174 = vunpack.c.h.b16 %v39
  %v175 = vunpack.c.l.b16 %v40
  %v176 = vunpack.c.h.b16 %v40
  %v177 = vunpack.c.l.b16 %v41
  %v178 = vunpack.c.h.b16 %v41
  %v179 = vunpack.c.l.b16 %v42
  %v180 = vunpack.c.h.b16 %v42
  %v181 = vunpack.c.l.b16 %v43
  %v182 = vunpack.c.h.b16 %v43
  %v183 = vunpack.c.l.b16 %v44
  %v184 = vunpack.c.h.b16 %v44
  %v185 = vunpack.c.l.b16 %v45
  %v186 = vunpack.c.h.b16 %v45
  %v187 = vunpack.c.l.b16 %v46
  %v188 = vunpack.c.h.b16 %v46
  %v189 = vunpack.c.l.b16 %v47
  %v190 = vunpack.c.h.b16 %v47
  %v191 = vunpack.c.l.b16 %v48
  %v192 = vunpack.c.h.b16 %v48
  %v193 = vunpack.c.l.b16 %v49
  %v194 = vunpack.c.h.b16 %v49
  %v195 = vunpack.c.l.b16 %v50
  %v196 = vunpack.c.h.b16 %v50
  %v197 = vunpack.c.l.b16 %v51
  %v198 = vunpack.c.h.b16 %v51
  %v199 = vunpack.c.l.b16 %v52
  %v200 = vunpack.c.h.b16 %v52
  %v201 = vunpack.c.l.b16 %v53
  %v202 = vunpack.c.h.b16 %v53
  %v203 = vunpack.c.l.b16 %v54
  %v204 = vunpack.c.h.b16 %v54
  %v205 = vpack.c.b16 %v137, %v133
  %v206 = vpack.c.b16 %v138, %v134
  %v207 = vpack.c.b16 %v139, %v135
  %v208 = vpack.c.b16 %v140, %v136
  %v209 = vpack.c.b16 %v145, %v141
  %v210 = vpack.c.b16 %v146, %v142
  %v211 = vpack.c.b16 %v147, %v143
  %v212 = vpack.c.b16 %v148, %v144
  %v213 = vpack.c.b16 %v153, %v149
  %v214 = vpack.c.b16 %v154, %v150
  %v215 = vpack.c.b16 %v155, %v151
  %v216 = vpack.c.b16 %v156, %v152
  %v217 = vpack.c.b16 %v161, %v157
  %v218 = vpack.c.b16 %v162, %v158
  %v219 = vpack.c.b16 %v163, %v159
  %v220 = vpack.c.b16 %v164, %v160
  %v221 = vpack.c.b16 %v169, %v165
  %v222 = vpack.c.b16 %v170, %v166
  %v223 = vpack.c.b16 %v171, %v167
  %v224 = vpack.c.b16 %v172, %v168
  %v225 = vpack.c.b16 %v177, %v173
  %v226 = vpack.c.b16 %v178, %v174
  %v227 = vpack.c.b16 %v179, %v175
  %v228 = vpack.c.b16 %v180, %v176
  %v229 = vpack.c.b16 %v185, %v181
  %v230 = vpack.c.b16 %v186, %v182
  %v231 = vpack.c.b16 %v187, %v183
  %v232 = vpack.c.b16 %v188, %v184
  %v233 = vpack.c.b16 %v193, %v189
  %v234 = vpack.c.b16 %v194, %v190
  %v235 = vpack.c.b16 %v195, %v191
  %v236 = vpack.c.b16 %v196, %v192
  %v237 = vpack.c.b16 %v201, %v197
  %v238 = vpack.c.b16 %v202, %v198
  %v239 = vpack.c.b16 %v203, %v199
  %v240 = vpack.c.b16 %v204, %v200
  %vm277 = vcmask 130048
  %v279 = vsel %vm277, %v92, 0
  %v282 = vsel %vm277, %v94, 0
  %284 = vmatpush.bf16.msra.mxu0 %v233
  %285 = vmatpush.bf16.msra.mxu0 %v229
  %286 = vmatpush.bf16.msra.mxu0 %v225
  %287 = vmatpush.bf16.msra.mxu0 %v221
  %288 = vmatpush.bf16.msra.mxu0 %v217
  %289 = vmatpush.bf16.msra.mxu0 %v213
  %290 = vmatpush.bf16.msra.mxu0 %v209
  %291 = vmatpush.bf16.msra.mxu0 %v205
  %292 = vmatmul.bf16.gmra.mxu0 %v91
  %v293 = vpop.f32.mrf.mxu0
  %v294 = vadd.f32 %v62, %v293
  %v295 = vpop.f32.mrf.mxu0
  %v296 = vadd.f32 %v67, %v295
  %297 = vmatmul.bf16.gmra.mxu0 %v93
  %v298 = vpop.f32.mrf.mxu0
  %v299 = vadd.f32 %v72, %v298
  %v300 = vpop.f32.mrf.mxu0
  %v301 = vadd.f32 %v77, %v300
  %302 = vdwg.mxu0
  %303 = vmatpush.bf16.msra.mxu0 0
  %304 = vmatpush.bf16.msra.mxu0 0
  %305 = vmatpush.bf16.msra.mxu0 0
  %306 = vmatpush.bf16.msra.mxu0 0
  %307 = vmatpush.bf16.msra.mxu0 0
  %308 = vmatpush.bf16.msra.mxu0 0
  %309 = vmatpush.bf16.msra.mxu0 0
  %310 = vmatpush.bf16.msra.mxu0 %v237
  %311 = vmatmul.bf16.gmra.mxu0 %v279
  %v312 = vpop.f32.mrf.mxu0
  %v313 = vadd.f32 %v294, %v312
  %v314 = vpop.f32.mrf.mxu0
  %v315 = vadd.f32 %v296, %v314
  %316 = vmatmul.bf16.gmra.mxu0 %v282
  %v317 = vpop.f32.mrf.mxu0
  %v318 = vadd.f32 %v299, %v317
  %v319 = vpop.f32.mrf.mxu0
  %v320 = vadd.f32 %v301, %v319
  %321 = vdwg.mxu0
  %322 = vmatpush.bf16.msra.mxu0 %v234
  %323 = vmatpush.bf16.msra.mxu0 %v230
  %324 = vmatpush.bf16.msra.mxu0 %v226
  %325 = vmatpush.bf16.msra.mxu0 %v222
  %326 = vmatpush.bf16.msra.mxu0 %v218
  %327 = vmatpush.bf16.msra.mxu0 %v214
  %328 = vmatpush.bf16.msra.mxu0 %v210
  %329 = vmatpush.bf16.msra.mxu0 %v206
  %330 = vmatmul.bf16.gmra.mxu0 %v91
  %v331 = vpop.f32.mrf.mxu0
  %v332 = vadd.f32 %v62, %v331
  %v333 = vpop.f32.mrf.mxu0
  %v334 = vadd.f32 %v67, %v333
  %335 = vmatmul.bf16.gmra.mxu0 %v93
  %v336 = vpop.f32.mrf.mxu0
  %v337 = vadd.f32 %v72, %v336
  %v338 = vpop.f32.mrf.mxu0
  %v339 = vadd.f32 %v77, %v338
  %340 = vdwg.mxu0
  %341 = vmatpush.bf16.msra.mxu0 0
  %342 = vmatpush.bf16.msra.mxu0 0
  %343 = vmatpush.bf16.msra.mxu0 0
  %344 = vmatpush.bf16.msra.mxu0 0
  %345 = vmatpush.bf16.msra.mxu0 0
  %346 = vmatpush.bf16.msra.mxu0 0
  %347 = vmatpush.bf16.msra.mxu0 0
  %348 = vmatpush.bf16.msra.mxu0 %v238
  %349 = vmatmul.bf16.gmra.mxu0 %v279
  %v350 = vpop.f32.mrf.mxu0
  %v351 = vadd.f32 %v332, %v350
  %v352 = vpop.f32.mrf.mxu0
  %v353 = vadd.f32 %v334, %v352
  %354 = vmatmul.bf16.gmra.mxu0 %v282
  %v355 = vpop.f32.mrf.mxu0
  %v356 = vadd.f32 %v337, %v355
  %v357 = vpop.f32.mrf.mxu0
  %v358 = vadd.f32 %v339, %v357
  %359 = vdwg.mxu0
  %360 = vmatpush.bf16.msra.mxu0 %v235
  %361 = vmatpush.bf16.msra.mxu0 %v231
  %362 = vmatpush.bf16.msra.mxu0 %v227
  %363 = vmatpush.bf16.msra.mxu0 %v223
  %364 = vmatpush.bf16.msra.mxu0 %v219
  %365 = vmatpush.bf16.msra.mxu0 %v215
  %366 = vmatpush.bf16.msra.mxu0 %v211
  %367 = vmatpush.bf16.msra.mxu0 %v207
  %368 = vmatmul.bf16.gmra.mxu0 %v91
  %v369 = vpop.f32.mrf.mxu0
  %v370 = vadd.f32 %v62, %v369
  %v371 = vpop.f32.mrf.mxu0
  %v372 = vadd.f32 %v67, %v371
  %373 = vmatmul.bf16.gmra.mxu0 %v93
  %v374 = vpop.f32.mrf.mxu0
  %v375 = vadd.f32 %v72, %v374
  %v376 = vpop.f32.mrf.mxu0
  %v377 = vadd.f32 %v77, %v376
  %378 = vdwg.mxu0
  %379 = vmatpush.bf16.msra.mxu0 0
  %380 = vmatpush.bf16.msra.mxu0 0
  %381 = vmatpush.bf16.msra.mxu0 0
  %382 = vmatpush.bf16.msra.mxu0 0
  %383 = vmatpush.bf16.msra.mxu0 0
  %384 = vmatpush.bf16.msra.mxu0 0
  %385 = vmatpush.bf16.msra.mxu0 0
  %386 = vmatpush.bf16.msra.mxu0 %v239
  %387 = vmatmul.bf16.gmra.mxu0 %v279
  %v388 = vpop.f32.mrf.mxu0
  %v389 = vadd.f32 %v370, %v388
  %v390 = vpop.f32.mrf.mxu0
  %v391 = vadd.f32 %v372, %v390
  %392 = vmatmul.bf16.gmra.mxu0 %v282
  %v393 = vpop.f32.mrf.mxu0
  %v394 = vadd.f32 %v375, %v393
  %v395 = vpop.f32.mrf.mxu0
  %v396 = vadd.f32 %v377, %v395
  %397 = vdwg.mxu0
  %398 = vmatpush.bf16.msra.mxu0 %v236
  %399 = vmatpush.bf16.msra.mxu0 %v232
  %400 = vmatpush.bf16.msra.mxu0 %v228
  %401 = vmatpush.bf16.msra.mxu0 %v224
  %402 = vmatpush.bf16.msra.mxu0 %v220
  %403 = vmatpush.bf16.msra.mxu0 %v216
  %404 = vmatpush.bf16.msra.mxu0 %v212
  %405 = vmatpush.bf16.msra.mxu0 %v208
  %406 = vmatmul.bf16.gmra.mxu0 %v91
  %v407 = vpop.f32.mrf.mxu0
  %v408 = vadd.f32 %v62, %v407
  %v409 = vpop.f32.mrf.mxu0
  %v410 = vadd.f32 %v67, %v409
  %411 = vmatmul.bf16.gmra.mxu0 %v93
  %v412 = vpop.f32.mrf.mxu0
  %v413 = vadd.f32 %v72, %v412
  %v414 = vpop.f32.mrf.mxu0
  %v415 = vadd.f32 %v77, %v414
  %416 = vdwg.mxu0
  %417 = vmatpush.bf16.msra.mxu0 0
  %418 = vmatpush.bf16.msra.mxu0 0
  %419 = vmatpush.bf16.msra.mxu0 0
  %420 = vmatpush.bf16.msra.mxu0 0
  %421 = vmatpush.bf16.msra.mxu0 0
  %422 = vmatpush.bf16.msra.mxu0 0
  %423 = vmatpush.bf16.msra.mxu0 0
  %424 = vmatpush.bf16.msra.mxu0 %v240
  %425 = vmatmul.bf16.gmra.mxu0 %v279
  %v426 = vpop.f32.mrf.mxu0
  %v427 = vadd.f32 %v408, %v426
  %v428 = vpop.f32.mrf.mxu0
  %v429 = vadd.f32 %v410, %v428
  %430 = vmatmul.bf16.gmra.mxu0 %v282
  %v431 = vpop.f32.mrf.mxu0
  %v432 = vadd.f32 %v413, %v431
  %v433 = vpop.f32.mrf.mxu0
  %v434 = vadd.f32 %v415, %v433
  %435 = vdwg.mxu0
  %vm436 = vcmp.ge.f32.partialorder %v313, 0.0
  %vm437 = vcmp.ge.f32.partialorder %v351, 0.0
  %vm438 = vcmp.ge.f32.partialorder %v389, 0.0
  %vm439 = vcmp.ge.f32.partialorder %v427, 0.0
  %vm440 = vcmp.ge.f32.partialorder %v315, 0.0
  %vm441 = vcmp.ge.f32.partialorder %v353, 0.0
  %vm442 = vcmp.ge.f32.partialorder %v391, 0.0
  %vm443 = vcmp.ge.f32.partialorder %v429, 0.0
  %vm444 = vcmp.ge.f32.partialorder %v318, 0.0
  %vm445 = vcmp.ge.f32.partialorder %v356, 0.0
  %vm446 = vcmp.ge.f32.partialorder %v394, 0.0
  %vm447 = vcmp.ge.f32.partialorder %v432, 0.0
  %vm448 = vcmp.ge.f32.partialorder %v320, 0.0
  %vm449 = vcmp.ge.f32.partialorder %v358, 0.0
  %vm450 = vcmp.ge.f32.partialorder %v396, 0.0
  %vm451 = vcmp.ge.f32.partialorder %v434, 0.0
  %v452 = vmul.f32 %v313, 0.2
  %v453 = vmul.f32 %v351, 0.2
  %v454 = vmul.f32 %v389, 0.2
  %v455 = vmul.f32 %v427, 0.2
  %v456 = vmul.f32 %v315, 0.2
  %v457 = vmul.f32 %v353, 0.2
  %v458 = vmul.f32 %v391, 0.2
  %v459 = vmul.f32 %v429, 0.2
  %v460 = vmul.f32 %v318, 0.2
  %v461 = vmul.f32 %v356, 0.2
  %v462 = vmul.f32 %v394, 0.2
  %v463 = vmul.f32 %v432, 0.2
  %v464 = vmul.f32 %v320, 0.2
  %v465 = vmul.f32 %v358, 0.2
  %v466 = vmul.f32 %v396, 0.2
  %v467 = vmul.f32 %v434, 0.2
  %v468 = vsel %vm436, %v313, %v452
  %v469 = vsel %vm437, %v351, %v453
  %v470 = vsel %vm438, %v389, %v454
  %v471 = vsel %vm439, %v427, %v455
  %v472 = vsel %vm440, %v315, %v456
  %v473 = vsel %vm441, %v353, %v457
  %v474 = vsel %vm442, %v391, %v458
  %v475 = vsel %vm443, %v429, %v459
  %v476 = vsel %vm444, %v318, %v460
  %v477 = vsel %vm445, %v356, %v461
  %v478 = vsel %vm446, %v394, %v462
  %v479 = vsel %vm447, %v432, %v463
  %v480 = vsel %vm448, %v320, %v464
  %v481 = vsel %vm449, %v358, %v465
  %v482 = vsel %vm450, %v396, %v466
  %v483 = vsel %vm451, %v434, %v467
  %v484 = vpack.c.bf16 %v469, %v468
  %v485 = vpack.c.bf16 %v471, %v470
  %v486 = vpack.c.bf16 %v473, %v472
  %v487 = vpack.c.bf16 %v475, %v474
  %v488 = vpack.c.bf16 %v477, %v476
  %v489 = vpack.c.bf16 %v479, %v478
  %v490 = vpack.c.bf16 %v481, %v480
  %v491 = vpack.c.bf16 %v483, %v482
  %492 = vst [vmem:[%s3] sm:$0xff] %v484
  %493 = vst [vmem:[%s3 + $0x8] sm:$0xff] %v485
  %494 = vst [vmem:[%s3 + $0x10] sm:$0xff] %v486
  %495 = vst [vmem:[%s3 + $0x18] sm:$0xff] %v487
  %496 = vst [vmem:[%s3 + $0x20] sm:$0xff] %v488
  %497 = vst [vmem:[%s3 + $0x28] sm:$0xff] %v489
  %498 = vst [vmem:[%s3 + $0x30] sm:$0xff] %v490
  %499 = vst [vmem:[%s3 + $0x38] sm:$0xff] %v491
  // Predicated region
  $region14: #{generator_forward.6} parent=0 // pred_check
    _
  $region15: #{generator_forward.6} parent=0 // pred_check_branch
    %501 = sbr.rel (0) target = $region17
  $region16: #{generator_forward.6} parent=0 // pred_region
    _
  $region17: #{generator_forward.6} parent=0 // pred_fallthru
    _
  // Predicated region
  $region18: #{generator_forward.6} parent=0 // pred_check
    _
  $region19: #{generator_forward.6} parent=0 // pred_check_branch
    %503 = sbr.rel (0) target = $region21
  $region20: #{generator_forward.6} parent=0 // pred_region
    _
  $region21: #{generator_forward.6} parent=0 // pred_fallthru
    _

// kernel: generator_forward.7
$region0: #{generator_forward.7}
  #allocation0 [shape = 'u32[]', space=smem, size = 0x4, offset = 0x4, fixed_abs, tag = 'smem constant byte address 0x4 - core index']
  #allocation1 [shape = 'u32[72,128]{1,0:T(1,128)}', space=vmem, size = 0x9000, scoped, tag = 'internal scratch']
  %s0 = inlined_call_operand.vmem [shape: bf16[12,72], index: 0, kind: input, shape index: {}]
  %s1 = inlined_call_operand.vmem [shape: bf16[72,2048], index: 1, kind: input, shape index: {}]
  %s2 = inlined_call_operand.vmem [shape: f32[12,1], index: 2, kind: input, shape index: {}]
  %s3 = inlined_call_operand.vmem [shape: f32[12,2048], index: 3, kind: output, shape index: {}]
  %s4 = sld [smem:[#allocation0]]
  $region22: #{generator_forward.7} parent=0
    _
  %s6 = ssub.s32 1, %s4
  %s7 = scalar_select 0, %s6, %s4
  // Predicated region
  $region2: #{generator_forward.7} parent=0 // pred_check
    _
  $region3: #{generator_forward.7} parent=0 // pred_check_branch
    %9 = sbr.rel (0) target = $region5
  $region4: #{generator_forward.7} parent=0 // pred_region
    _
  $region5: #{generator_forward.7} parent=0 // pred_fallthru
    _
  // Predicated region
  $region6: #{generator_forward.7} parent=0 // pred_check
    _
  $region7: #{generator_forward.7} parent=0 // pred_check_branch
    %11 = sbr.rel (0) target = $region9
  $region8: #{generator_forward.7} parent=0 // pred_region
    _
  $region9: #{generator_forward.7} parent=0 // pred_fallthru
    _
  // Predicated region
  $region10: #{generator_forward.7} parent=0 // pred_check
    _
  $region11: #{generator_forward.7} parent=0 // pred_check_branch
    %13 = sbr.rel (0) target = $region13
  $region12: #{generator_forward.7} parent=0 // pred_region
    _
  $region13: #{generator_forward.7} parent=0 // pred_fallthru
    _
  %v15 = vld [vmem:[%s0] sm:$0xf]
  %v16 = vld [vmem:[%s0 + $0x4] sm:$0x3]
  %v17 = vld [vmem:[%s1] sm:$0xff]
  %v18 = vld [vmem:[%s1 + $0x8] sm:$0xff]
  %v19 = vld [vmem:[%s1 + $0x10] sm:$0xff]
  %v20 = vld [vmem:[%s1 + $0x18] sm:$0xff]
  %v21 = vld [vmem:[%s1 + $0x20] sm:$0xff]
  %v22 = vld [vmem:[%s1 + $0x28] sm:$0xff]
  %v23 = vld [vmem:[%s1 + $0x30] sm:$0xff]
  %v24 = vld [vmem:[%s1 + $0x38] sm:$0xff]
  %v25 = vld [vmem:[%s1 + $0x40] sm:$0xff]
  %v26 = vld [vmem:[%s1 + $0x48] sm:$0xff]
  %v27 = vld [vmem:[%s1 + $0x50] sm:$0xff]
  %v28 = vld [vmem:[%s1 + $0x58] sm:$0xff]
  %v29 = vld [vmem:[%s1 + $0x60] sm:$0xff]
  %v30 = vld [vmem:[%s1 + $0x68] sm:$0xff]
  %v31 = vld [vmem:[%s1 + $0x70] sm:$0xff]
  %v32 = vld [vmem:[%s1 + $0x78] sm:$0xff]
  %v33 = vld [vmem:[%s1 + $0x80] sm:$0xff]
  %v34 = vld [vmem:[%s1 + $0x88] sm:$0xff]
  %v35 = vld [vmem:[%s1 + $0x90] sm:$0xff]
  %v36 = vld [vmem:[%s1 + $0x98] sm:$0xff]
  %v37 = vld [vmem:[%s1 + $0xa0] sm:$0xff]
  %v38 = vld [vmem:[%s1 + $0xa8] sm:$0xff]
  %v39 = vld [vmem:[%s1 + $0xb0] sm:$0xff]
  %v40 = vld [vmem:[%s1 + $0xb8] sm:$0xff]
  %v41 = vld [vmem:[%s1 + $0xc0] sm:$0xff]
  %v42 = vld [vmem:[%s1 + $0xc8] sm:$0xff]
  %v43 = vld [vmem:[%s1 + $0xd0] sm:$0xff]
  %v44 = vld [vmem:[%s1 + $0xd8] sm:$0xff]
  %v45 = vld [vmem:[%s1 + $0xe0] sm:$0xff]
  %v46 = vld [vmem:[%s1 + $0xe8] sm:$0xff]
  %v47 = vld [vmem:[%s1 + $0xf0] sm:$0xff]
  %v48 = vld [vmem:[%s1 + $0xf8] sm:$0xff]
  %v49 = vld [vmem:[%s1 + $0x100] sm:$0xff]
  %v50 = vld [vmem:[%s1 + $0x108] sm:$0xff]
  %v51 = vld [vmem:[%s1 + $0x110] sm:$0xff]
  %v52 = vld [vmem:[%s1 + $0x118] sm:$0xff]
  %v53 = vld [vmem:[%s1 + $0x120] sm:$0xff]
  %v54 = vld [vmem:[%s1 + $0x128] sm:$0xff]
  %v55 = vld [vmem:[%s1 + $0x130] sm:$0xff]
  %v56 = vld [vmem:[%s1 + $0x138] sm:$0xff]
  %v57 = vld [vmem:[%s1 + $0x140] sm:$0xff]
  %v58 = vld [vmem:[%s1 + $0x148] sm:$0xff]
  %v59 = vld [vmem:[%s1 + $0x150] sm:$0xff]
  %v60 = vld [vmem:[%s1 + $0x158] sm:$0xff]
  %v61 = vld [vmem:[%s1 + $0x160] sm:$0xff]
  %v62 = vld [vmem:[%s1 + $0x168] sm:$0xff]
  %v63 = vld [vmem:[%s1 + $0x170] sm:$0xff]
  %v64 = vld [vmem:[%s1 + $0x178] sm:$0xff]
  %v65 = vld [vmem:[%s1 + $0x180] sm:$0xff]
  %v66 = vld [vmem:[%s1 + $0x188] sm:$0xff]
  %v67 = vld [vmem:[%s1 + $0x190] sm:$0xff]
  %v68 = vld [vmem:[%s1 + $0x198] sm:$0xff]
  %v69 = vld [vmem:[%s1 + $0x1a0] sm:$0xff]
  %v70 = vld [vmem:[%s1 + $0x1a8] sm:$0xff]
  %v71 = vld [vmem:[%s1 + $0x1b0] sm:$0xff]
  %v72 = vld [vmem:[%s1 + $0x1b8] sm:$0xff]
  %v73 = vld [vmem:[%s1 + $0x1c0] sm:$0xff]
  %v74 = vld [vmem:[%s1 + $0x1c8] sm:$0xff]
  %v75 = vld [vmem:[%s1 + $0x1d0] sm:$0xff]
  %v76 = vld [vmem:[%s1 + $0x1d8] sm:$0xff]
  %v77 = vld [vmem:[%s1 + $0x1e0] sm:$0xff]
  %v78 = vld [vmem:[%s1 + $0x1e8] sm:$0xff]
  %v79 = vld [vmem:[%s1 + $0x1f0] sm:$0xff]
  %v80 = vld [vmem:[%s1 + $0x1f8] sm:$0xff]
  %v81 = vld [vmem:[%s1 + $0x200] sm:$0xff]
  %v82 = vld [vmem:[%s1 + $0x208] sm:$0xff]
  %v83 = vld [vmem:[%s1 + $0x210] sm:$0xff]
  %v84 = vld [vmem:[%s1 + $0x218] sm:$0xff]
  %v85 = vld [vmem:[%s1 + $0x220] sm:$0xff]
  %v86 = vld [vmem:[%s1 + $0x228] sm:$0xff]
  %v87 = vld [vmem:[%s1 + $0x230] sm:$0xff]
  %v88 = vld [vmem:[%s1 + $0x238] sm:$0xff]
  %v89 = vld [vmem:[%s2] sm:$0xff]
  %v90 = vld [vmem:[%s2 + $0x8] sm:$0xf]
  %92 = vset.pattern.permute.xlu0 0
  %93 = vperm.xlu0 %92, %v89
  %v94 = vpop.permute.xlu0 %93
  %97 = vset.pattern.permute.xlu0 0
  %98 = vperm.xlu0 %97, %v90
  %v99 = vpop.permute.xlu0 %98
  %v103 = vunpack.c.l.b16 %v15
  %v104 = vunpack.c.l.b16 %v16
  %v105 = vpack.c.b16 %v104, %v103
  %v178 = vunpack.c.l.b16 %v17
  %v179 = vunpack.c.h.b16 %v17
  %v180 = vunpack.c.l.b16 %v18
  %v181 = vunpack.c.h.b16 %v18
  %v182 = vunpack.c.l.b16 %v19
  %v183 = vunpack.c.h.b16 %v19
  %v184 = vunpack.c.l.b16 %v20
  %v185 = vunpack.c.h.b16 %v20
  %v186 = vunpack.c.l.b16 %v21
  %v187 = vunpack.c.h.b16 %v21
  %v188 = vunpack.c.l.b16 %v22
  %v189 = vunpack.c.h.b16 %v22
  %v190 = vunpack.c.l.b16 %v23
  %v191 = vunpack.c.h.b16 %v23
  %v192 = vunpack.c.l.b16 %v24
  %v193 = vunpack.c.h.b16 %v24
  %v194 = vunpack.c.l.b16 %v25
  %v195 = vunpack.c.h.b16 %v25
  %v196 = vunpack.c.l.b16 %v26
  %v197 = vunpack.c.h.b16 %v26
  %v198 = vunpack.c.l.b16 %v27
  %v199 = vunpack.c.h.b16 %v27
  %v200 = vunpack.c.l.b16 %v28
  %v201 = vunpack.c.h.b16 %v28
  %v202 = vunpack.c.l.b16 %v29
  %v203 = vunpack.c.h.b16 %v29
  %v204 = vunpack.c.l.b16 %v30
  %v205 = vunpack.c.h.b16 %v30
  %v206 = vunpack.c.l.b16 %v31
  %v207 = vunpack.c.h.b16 %v31
  %v208 = vunpack.c.l.b16 %v32
  %v209 = vunpack.c.h.b16 %v32
  %v210 = vunpack.c.l.b16 %v33
  %v211 = vunpack.c.h.b16 %v33
  %v212 = vunpack.c.l.b16 %v34
  %v213 = vunpack.c.h.b16 %v34
  %v214 = vunpack.c.l.b16 %v35
  %v215 = vunpack.c.h.b16 %v35
  %v216 = vunpack.c.l.b16 %v36
  %v217 = vunpack.c.h.b16 %v36
  %v218 = vunpack.c.l.b16 %v37
  %v219 = vunpack.c.h.b16 %v37
  %v220 = vunpack.c.l.b16 %v38
  %v221 = vunpack.c.h.b16 %v38
  %v222 = vunpack.c.l.b16 %v39
  %v223 = vunpack.c.h.b16 %v39
  %v224 = vunpack.c.l.b16 %v40
  %v225 = vunpack.c.h.b16 %v40
  %v226 = vunpack.c.l.b16 %v41
  %v227 = vunpack.c.h.b16 %v41
  %v228 = vunpack.c.l.b16 %v42
  %v229 = vunpack.c.h.b16 %v42
  %v230 = vunpack.c.l.b16 %v43
  %v231 = vunpack.c.h.b16 %v43
  %v232 = vunpack.c.l.b16 %v44
  %v233 = vunpack.c.h.b16 %v44
  %v234 = vunpack.c.l.b16 %v45
  %v235 = vunpack.c.h.b16 %v45
  %v236 = vunpack.c.l.b16 %v46
  %v237 = vunpack.c.h.b16 %v46
  %v238 = vunpack.c.l.b16 %v47
  %v239 = vunpack.c.h.b16 %v47
  %v240 = vunpack.c.l.b16 %v48
  %v241 = vunpack.c.h.b16 %v48
  %v242 = vunpack.c.l.b16 %v49
  %v243 = vunpack.c.h.b16 %v49
  %v244 = vunpack.c.l.b16 %v50
  %v245 = vunpack.c.h.b16 %v50
  %v246 = vunpack.c.l.b16 %v51
  %v247 = vunpack.c.h.b16 %v51
  %v248 = vunpack.c.l.b16 %v52
  %v249 = vunpack.c.h.b16 %v52
  %v250 = vunpack.c.l.b16 %v53
  %v251 = vunpack.c.h.b16 %v53
  %v252 = vunpack.c.l.b16 %v54
  %v253 = vunpack.c.h.b16 %v54
  %v254 = vunpack.c.l.b16 %v55
  %v255 = vunpack.c.h.b16 %v55
  %v256 = vunpack.c.l.b16 %v56
  %v257 = vunpack.c.h.b16 %v56
  %v258 = vunpack.c.l.b16 %v57
  %v259 = vunpack.c.h.b16 %v57
  %v260 = vunpack.c.l.b16 %v58
  %v261 = vunpack.c.h.b16 %v58
  %v262 = vunpack.c.l.b16 %v59
  %v263 = vunpack.c.h.b16 %v59
  %v264 = vunpack.c.l.b16 %v60
  %v265 = vunpack.c.h.b16 %v60
  %v266 = vunpack.c.l.b16 %v61
  %v267 = vunpack.c.h.b16 %v61
  %v268 = vunpack.c.l.b16 %v62
  %v269 = vunpack.c.h.b16 %v62
  %v270 = vunpack.c.l.b16 %v63
  %v271 = vunpack.c.h.b16 %v63
  %v272 = vunpack.c.l.b16 %v64
  %v273 = vunpack.c.h.b16 %v64
  %v274 = vunpack.c.l.b16 %v65
  %v275 = vunpack.c.h.b16 %v65
  %v276 = vunpack.c.l.b16 %v66
  %v277 = vunpack.c.h.b16 %v66
  %v278 = vunpack.c.l.b16 %v67
  %v279 = vunpack.c.h.b16 %v67
  %v280 = vunpack.c.l.b16 %v68
  %v281 = vunpack.c.h.b16 %v68
  %v282 = vunpack.c.l.b16 %v69
  %v283 = vunpack.c.h.b16 %v69
  %v284 = vunpack.c.l.b16 %v70
  %v285 = vunpack.c.h.b16 %v70
  %v286 = vunpack.c.l.b16 %v71
  %v287 = vunpack.c.h.b16 %v71
  %v288 = vunpack.c.l.b16 %v72
  %v289 = vunpack.c.h.b16 %v72
  %v290 = vunpack.c.l.b16 %v73
  %v291 = vunpack.c.h.b16 %v73
  %v292 = vunpack.c.l.b16 %v74
  %v293 = vunpack.c.h.b16 %v74
  %v294 = vunpack.c.l.b16 %v75
  %v295 = vunpack.c.h.b16 %v75
  %v296 = vunpack.c.l.b16 %v76
  %v297 = vunpack.c.h.b16 %v76
  %v298 = vunpack.c.l.b16 %v77
  %v299 = vunpack.c.h.b16 %v77
  %v300 = vunpack.c.l.b16 %v78
  %v301 = vunpack.c.h.b16 %v78
  %v302 = vunpack.c.l.b16 %v79
  %v303 = vunpack.c.h.b16 %v79
  %v304 = vunpack.c.l.b16 %v80
  %v305 = vunpack.c.h.b16 %v80
  %v306 = vunpack.c.l.b16 %v81
  %v307 = vunpack.c.h.b16 %v81
  %v308 = vunpack.c.l.b16 %v82
  %v309 = vunpack.c.h.b16 %v82
  %v310 = vunpack.c.l.b16 %v83
  %v311 = vunpack.c.h.b16 %v83
  %v312 = vunpack.c.l.b16 %v84
  %v313 = vunpack.c.h.b16 %v84
  %v314 = vunpack.c.l.b16 %v85
  %v315 = vunpack.c.h.b16 %v85
  %v316 = vunpack.c.l.b16 %v86
  %v317 = vunpack.c.h.b16 %v86
  %v318 = vunpack.c.l.b16 %v87
  %v319 = vunpack.c.h.b16 %v87
  %v320 = vunpack.c.l.b16 %v88
  %v321 = vunpack.c.h.b16 %v88
  %v322 = vpack.c.b16 %v194, %v178
  %v323 = vpack.c.b16 %v195, %v179
  %v324 = vpack.c.b16 %v196, %v180
  %v325 = vpack.c.b16 %v197, %v181
  %v326 = vpack.c.b16 %v198, %v182
  %v327 = vpack.c.b16 %v199, %v183
  %v328 = vpack.c.b16 %v200, %v184
  %v329 = vpack.c.b16 %v201, %v185
  %v330 = vpack.c.b16 %v202, %v186
  %v331 = vpack.c.b16 %v203, %v187
  %v332 = vpack.c.b16 %v204, %v188
  %v333 = vpack.c.b16 %v205, %v189
  %v334 = vpack.c.b16 %v206, %v190
  %v335 = vpack.c.b16 %v207, %v191
  %v336 = vpack.c.b16 %v208, %v192
  %v337 = vpack.c.b16 %v209, %v193
  %v338 = vpack.c.b16 %v226, %v210
  %v339 = vpack.c.b16 %v227, %v211
  %v340 = vpack.c.b16 %v228, %v212
  %v341 = vpack.c.b16 %v229, %v213
  %v342 = vpack.c.b16 %v230, %v214
  %v343 = vpack.c.b16 %v231, %v215
  %v344 = vpack.c.b16 %v232, %v216
  %v345 = vpack.c.b16 %v233, %v217
  %v346 = vpack.c.b16 %v234, %v218
  %v347 = vpack.c.b16 %v235, %v219
  %v348 = vpack.c.b16 %v236, %v220
  %v349 = vpack.c.b16 %v237, %v221
  %v350 = vpack.c.b16 %v238, %v222
  %v351 = vpack.c.b16 %v239, %v223
  %v352 = vpack.c.b16 %v240, %v224
  %v353 = vpack.c.b16 %v241, %v225
  %v354 = vpack.c.b16 %v258, %v242
  %v355 = vpack.c.b16 %v259, %v243
  %v356 = vpack.c.b16 %v260, %v244
  %v357 = vpack.c.b16 %v261, %v245
  %v358 = vpack.c.b16 %v262, %v246
  %v359 = vpack.c.b16 %v263, %v247
  %v360 = vpack.c.b16 %v264, %v248
  %v361 = vpack.c.b16 %v265, %v249
  %v362 = vpack.c.b16 %v266, %v250
  %v363 = vpack.c.b16 %v267, %v251
  %v364 = vpack.c.b16 %v268, %v252
  %v365 = vpack.c.b16 %v269, %v253
  %v366 = vpack.c.b16 %v270, %v254
  %v367 = vpack.c.b16 %v271, %v255
  %v368 = vpack.c.b16 %v272, %v256
  %v369 = vpack.c.b16 %v273, %v257
  %v370 = vpack.c.b16 %v290, %v274
  %v371 = vpack.c.b16 %v291, %v275
  %v372 = vpack.c.b16 %v292, %v276
  %v373 = vpack.c.b16 %v293, %v277
  %v374 = vpack.c.b16 %v294, %v278
  %v375 = vpack.c.b16 %v295, %v279
  %v376 = vpack.c.b16 %v296, %v280
  %v377 = vpack.c.b16 %v297, %v281
  %v378 = vpack.c.b16 %v298, %v282
  %v379 = vpack.c.b16 %v299, %v283
  %v380 = vpack.c.b16 %v300, %v284
  %v381 = vpack.c.b16 %v301, %v285
  %v382 = vpack.c.b16 %v302, %v286
  %v383 = vpack.c.b16 %v303, %v287
  %v384 = vpack.c.b16 %v304, %v288
  %v385 = vpack.c.b16 %v305, %v289
  %v386 = vpack.c.b16 %v306, %v306
  %v387 = vpack.c.b16 %v307, %v307
  %v388 = vpack.c.b16 %v308, %v308
  %v389 = vpack.c.b16 %v309, %v309
  %v390 = vpack.c.b16 %v310, %v310
  %v391 = vpack.c.b16 %v311, %v311
  %v392 = vpack.c.b16 %v312, %v312
  %v393 = vpack.c.b16 %v313, %v313
  %v394 = vpack.c.b16 %v314, %v314
  %v395 = vpack.c.b16 %v315, %v315
  %v396 = vpack.c.b16 %v316, %v316
  %v397 = vpack.c.b16 %v317, %v317
  %v398 = vpack.c.b16 %v318, %v318
  %v399 = vpack.c.b16 %v319, %v319
  %v400 = vpack.c.b16 %v320, %v320
  %v401 = vpack.c.b16 %v321, %v321
  %vm466 = vcmask 588800
  %v468 = vsel %vm466, %v105, 0
  %vm470 = vcmask 1043456
  %v472 = vsel %vm470, %v386, 0
  %v475 = vsel %vm470, %v387, 0
  %v478 = vsel %vm470, %v388, 0
  %v481 = vsel %vm470, %v389, 0
  %v484 = vsel %vm470, %v390, 0
  %v487 = vsel %vm470, %v391, 0
  %v490 = vsel %vm470, %v392, 0
  %v493 = vsel %vm470, %v393, 0
  %v496 = vsel %vm470, %v394, 0
  %v499 = vsel %vm470, %v395, 0
  %v502 = vsel %vm470, %v396, 0
  %v505 = vsel %vm470, %v397, 0
  %v508 = vsel %vm470, %v398, 0
  %v511 = vsel %vm470, %v399, 0
  %v514 = vsel %vm470, %v400, 0
  %v517 = vsel %vm470, %v401, 0
  %519 = vmatpush.bf16.msra.mxu0 0
  %520 = vmatpush.bf16.msra.mxu0 0
  %521 = vmatpush.bf16.msra.mxu0 0
  %522 = vmatpush.bf16.msra.mxu0 %v472
  %523 = vmatpush.bf16.msra.mxu0 %v370
  %524 = vmatpush.bf16.msra.mxu0 %v354
  %525 = vmatpush.bf16.msra.mxu0 %v338
  %526 = vmatpush.bf16.msra.mxu0 %v322
  %527 = vmatmul.bf16.gmra.mxu0 %v468
  %v528 = vpop.f32.mrf.mxu0
  %v529 = vadd.f32 %v94, %v528
  %v530 = vpop.f32.mrf.mxu0
  %v531 = vadd.f32 %v99, %v530
  %532 = vdwg.mxu0
  %533 = vmatpush.bf16.msra.mxu0 0
  %534 = vmatpush.bf16.msra.mxu0 0
  %535 = vmatpush.bf16.msra.mxu0 0
  %536 = vmatpush.bf16.msra.mxu0 %v475
  %537 = vmatpush.bf16.msra.mxu0 %v371
  %538 = vmatpush.bf16.msra.mxu0 %v355
  %539 = vmatpush.bf16.msra.mxu0 %v339
  %540 = vmatpush.bf16.msra.mxu0 %v323
  %541 = vmatmul.bf16.gmra.mxu0 %v468
  %v542 = vpop.f32.mrf.mxu0
  %v543 = vadd.f32 %v94, %v542
  %v544 = vpop.f32.mrf.mxu0
  %v545 = vadd.f32 %v99, %v544
  %546 = vdwg.mxu0
  %547 = vmatpush.bf16.msra.mxu0 0
  %548 = vmatpush.bf16.msra.mxu0 0
  %549 = vmatpush.bf16.msra.mxu0 0
  %550 = vmatpush.bf16.msra.mxu0 %v478
  %551 = vmatpush.bf16.msra.mxu0 %v372
  %552 = vmatpush.bf16.msra.mxu0 %v356
  %553 = vmatpush.bf16.msra.mxu0 %v340
  %554 = vmatpush.bf16.msra.mxu0 %v324
  %555 = vmatmul.bf16.gmra.mxu0 %v468
  %v556 = vpop.f32.mrf.mxu0
  %v557 = vadd.f32 %v94, %v556
  %v558 = vpop.f32.mrf.mxu0
  %v559 = vadd.f32 %v99, %v558
  %560 = vdwg.mxu0
  %561 = vmatpush.bf16.msra.mxu0 0
  %562 = vmatpush.bf16.msra.mxu0 0
  %563 = vmatpush.bf16.msra.mxu0 0
  %564 = vmatpush.bf16.msra.mxu0 %v481
  %565 = vmatpush.bf16.msra.mxu0 %v373
  %566 = vmatpush.bf16.msra.mxu0 %v357
  %567 = vmatpush.bf16.msra.mxu0 %v341
  %568 = vmatpush.bf16.msra.mxu0 %v325
  %569 = vmatmul.bf16.gmra.mxu0 %v468
  %v570 = vpop.f32.mrf.mxu0
  %v571 = vadd.f32 %v94, %v570
  %v572 = vpop.f32.mrf.mxu0
  %v573 = vadd.f32 %v99, %v572
  %574 = vdwg.mxu0
  %575 = vmatpush.bf16.msra.mxu0 0
  %576 = vmatpush.bf16.msra.mxu0 0
  %577 = vmatpush.bf16.msra.mxu0 0
  %578 = vmatpush.bf16.msra.mxu0 %v484
  %579 = vmatpush.bf16.msra.mxu0 %v374
  %580 = vmatpush.bf16.msra.mxu0 %v358
  %581 = vmatpush.bf16.msra.mxu0 %v342
  %582 = vmatpush.bf16.msra.mxu0 %v326
  %583 = vmatmul.bf16.gmra.mxu0 %v468
  %v584 = vpop.f32.mrf.mxu0
  %v585 = vadd.f32 %v94, %v584
  %v586 = vpop.f32.mrf.mxu0
  %v587 = vadd.f32 %v99, %v586
  %588 = vdwg.mxu0
  %589 = vmatpush.bf16.msra.mxu0 0
  %590 = vmatpush.bf16.msra.mxu0 0
  %591 = vmatpush.bf16.msra.mxu0 0
  %592 = vmatpush.bf16.msra.mxu0 %v487
  %593 = vmatpush.bf16.msra.mxu0 %v375
  %594 = vmatpush.bf16.msra.mxu0 %v359
  %595 = vmatpush.bf16.msra.mxu0 %v343
  %596 = vmatpush.bf16.msra.mxu0 %v327
  %597 = vmatmul.bf16.gmra.mxu0 %v468
  %v598 = vpop.f32.mrf.mxu0
  %v599 = vadd.f32 %v94, %v598
  %v600 = vpop.f32.mrf.mxu0
  %v601 = vadd.f32 %v99, %v600
  %602 = vdwg.mxu0
  %603 = vmatpush.bf16.msra.mxu0 0
  %604 = vmatpush.bf16.msra.mxu0 0
  %605 = vmatpush.bf16.msra.mxu0 0
  %606 = vmatpush.bf16.msra.mxu0 %v490
  %607 = vmatpush.bf16.msra.mxu0 %v376
  %608 = vmatpush.bf16.msra.mxu0 %v360
  %609 = vmatpush.bf16.msra.mxu0 %v344
  %610 = vmatpush.bf16.msra.mxu0 %v328
  %611 = vmatmul.bf16.gmra.mxu0 %v468
  %v612 = vpop.f32.mrf.mxu0
  %v613 = vadd.f32 %v94, %v612
  %v614 = vpop.f32.mrf.mxu0
  %v615 = vadd.f32 %v99, %v614
  %616 = vdwg.mxu0
  %617 = vmatpush.bf16.msra.mxu0 0
  %618 = vmatpush.bf16.msra.mxu0 0
  %619 = vmatpush.bf16.msra.mxu0 0
  %620 = vmatpush.bf16.msra.mxu0 %v493
  %621 = vmatpush.bf16.msra.mxu0 %v377
  %622 = vmatpush.bf16.msra.mxu0 %v361
  %623 = vmatpush.bf16.msra.mxu0 %v345
  %624 = vmatpush.bf16.msra.mxu0 %v329
  %625 = vmatmul.bf16.gmra.mxu0 %v468
  %v626 = vpop.f32.mrf.mxu0
  %v627 = vadd.f32 %v94, %v626
  %v628 = vpop.f32.mrf.mxu0
  %v629 = vadd.f32 %v99, %v628
  %630 = vdwg.mxu0
  %631 = vmatpush.bf16.msra.mxu0 0
  %632 = vmatpush.bf16.msra.mxu0 0
  %633 = vmatpush.bf16.msra.mxu0 0
  %634 = vmatpush.bf16.msra.mxu0 %v496
  %635 = vmatpush.bf16.msra.mxu0 %v378
  %636 = vmatpush.bf16.msra.mxu0 %v362
  %637 = vmatpush.bf16.msra.mxu0 %v346
  %638 = vmatpush.bf16.msra.mxu0 %v330
  %639 = vmatmul.bf16.gmra.mxu0 %v468
  %v640 = vpop.f32.mrf.mxu0
  %v641 = vadd.f32 %v94, %v640
  %v642 = vpop.f32.mrf.mxu0
  %v643 = vadd.f32 %v99, %v642
  %644 = vdwg.mxu0
  %645 = vmatpush.bf16.msra.mxu0 0
  %646 = vmatpush.bf16.msra.mxu0 0
  %647 = vmatpush.bf16.msra.mxu0 0
  %648 = vmatpush.bf16.msra.mxu0 %v499
  %649 = vmatpush.bf16.msra.mxu0 %v379
  %650 = vmatpush.bf16.msra.mxu0 %v363
  %651 = vmatpush.bf16.msra.mxu0 %v347
  %652 = vmatpush.bf16.msra.mxu0 %v331
  %653 = vmatmul.bf16.gmra.mxu0 %v468
  %v654 = vpop.f32.mrf.mxu0
  %v655 = vadd.f32 %v94, %v654
  %v656 = vpop.f32.mrf.mxu0
  %v657 = vadd.f32 %v99, %v656
  %658 = vdwg.mxu0
  %659 = vmatpush.bf16.msra.mxu0 0
  %660 = vmatpush.bf16.msra.mxu0 0
  %661 = vmatpush.bf16.msra.mxu0 0
  %662 = vmatpush.bf16.msra.mxu0 %v502
  %663 = vmatpush.bf16.msra.mxu0 %v380
  %664 = vmatpush.bf16.msra.mxu0 %v364
  %665 = vmatpush.bf16.msra.mxu0 %v348
  %666 = vmatpush.bf16.msra.mxu0 %v332
  %667 = vmatmul.bf16.gmra.mxu0 %v468
  %v668 = vpop.f32.mrf.mxu0
  %v669 = vadd.f32 %v94, %v668
  %v670 = vpop.f32.mrf.mxu0
  %v671 = vadd.f32 %v99, %v670
  %672 = vdwg.mxu0
  %673 = vmatpush.bf16.msra.mxu0 0
  %674 = vmatpush.bf16.msra.mxu0 0
  %675 = vmatpush.bf16.msra.mxu0 0
  %676 = vmatpush.bf16.msra.mxu0 %v505
  %677 = vmatpush.bf16.msra.mxu0 %v381
  %678 = vmatpush.bf16.msra.mxu0 %v365
  %679 = vmatpush.bf16.msra.mxu0 %v349
  %680 = vmatpush.bf16.msra.mxu0 %v333
  %681 = vmatmul.bf16.gmra.mxu0 %v468
  %v682 = vpop.f32.mrf.mxu0
  %v683 = vadd.f32 %v94, %v682
  %v684 = vpop.f32.mrf.mxu0
  %v685 = vadd.f32 %v99, %v684
  %686 = vdwg.mxu0
  %687 = vmatpush.bf16.msra.mxu0 0
  %688 = vmatpush.bf16.msra.mxu0 0
  %689 = vmatpush.bf16.msra.mxu0 0
  %690 = vmatpush.bf16.msra.mxu0 %v508
  %691 = vmatpush.bf16.msra.mxu0 %v382
  %692 = vmatpush.bf16.msra.mxu0 %v366
  %693 = vmatpush.bf16.msra.mxu0 %v350
  %694 = vmatpush.bf16.msra.mxu0 %v334
  %695 = vmatmul.bf16.gmra.mxu0 %v468
  %v696 = vpop.f32.mrf.mxu0
  %v697 = vadd.f32 %v94, %v696
  %v698 = vpop.f32.mrf.mxu0
  %v699 = vadd.f32 %v99, %v698
  %700 = vdwg.mxu0
  %701 = vmatpush.bf16.msra.mxu0 0
  %702 = vmatpush.bf16.msra.mxu0 0
  %703 = vmatpush.bf16.msra.mxu0 0
  %704 = vmatpush.bf16.msra.mxu0 %v511
  %705 = vmatpush.bf16.msra.mxu0 %v383
  %706 = vmatpush.bf16.msra.mxu0 %v367
  %707 = vmatpush.bf16.msra.mxu0 %v351
  %708 = vmatpush.bf16.msra.mxu0 %v335
  %709 = vmatmul.bf16.gmra.mxu0 %v468
  %v710 = vpop.f32.mrf.mxu0
  %v711 = vadd.f32 %v94, %v710
  %v712 = vpop.f32.mrf.mxu0
  %v713 = vadd.f32 %v99, %v712
  %714 = vdwg.mxu0
  %715 = vmatpush.bf16.msra.mxu0 0
  %716 = vmatpush.bf16.msra.mxu0 0
  %717 = vmatpush.bf16.msra.mxu0 0
  %718 = vmatpush.bf16.msra.mxu0 %v514
  %719 = vmatpush.bf16.msra.mxu0 %v384
  %720 = vmatpush.bf16.msra.mxu0 %v368
  %721 = vmatpush.bf16.msra.mxu0 %v352
  %722 = vmatpush.bf16.msra.mxu0 %v336
  %723 = vmatmul.bf16.gmra.mxu0 %v468
  %v724 = vpop.f32.mrf.mxu0
  %v725 = vadd.f32 %v94, %v724
  %v726 = vpop.f32.mrf.mxu0
  %v727 = vadd.f32 %v99, %v726
  %728 = vdwg.mxu0
  %729 = vmatpush.bf16.msra.mxu0 0
  %730 = vmatpush.bf16.msra.mxu0 0
  %731 = vmatpush.bf16.msra.mxu0 0
  %732 = vmatpush.bf16.msra.mxu0 %v517
  %733 = vmatpush.bf16.msra.mxu0 %v385
  %734 = vmatpush.bf16.msra.mxu0 %v369
  %735 = vmatpush.bf16.msra.mxu0 %v353
  %736 = vmatpush.bf16.msra.mxu0 %v337
  %737 = vmatmul.bf16.gmra.mxu0 %v468
  %v738 = vpop.f32.mrf.mxu0
  %v739 = vadd.f32 %v94, %v738
  %v740 = vpop.f32.mrf.mxu0
  %v741 = vadd.f32 %v99, %v740
  %742 = vdwg.mxu0
  %v743 = vtanh.pop %v529
  %v744 = vtanh.pop %v543
  %v745 = vtanh.pop %v557
  %v746 = vtanh.pop %v571
  %v747 = vtanh.pop %v585
  %v748 = vtanh.pop %v599
  %v749 = vtanh.pop %v613
  %v750 = vtanh.pop %v627
  %v751 = vtanh.pop %v641
  %v752 = vtanh.pop %v655
  %v753 = vtanh.pop %v669
  %v754 = vtanh.pop %v683
  %v755 = vtanh.pop %v697
  %v756 = vtanh.pop %v711
  %v757 = vtanh.pop %v725
  %v758 = vtanh.pop %v739
  %v759 = vtanh.pop %v531
  %v760 = vtanh.pop %v545
  %v761 = vtanh.pop %v559
  %v762 = vtanh.pop %v573
  %v763 = vtanh.pop %v587
  %v764 = vtanh.pop %v601
  %v765 = vtanh.pop %v615
  %v766 = vtanh.pop %v629
  %v767 = vtanh.pop %v643
  %v768 = vtanh.pop %v657
  %v769 = vtanh.pop %v671
  %v770 = vtanh.pop %v685
  %v771 = vtanh.pop %v699
  %v772 = vtanh.pop %v713
  %v773 = vtanh.pop %v727
  %v774 = vtanh.pop %v741
  %775 = vst [vmem:[%s3] sm:$0xff] %v743
  %776 = vst [vmem:[%s3 + $0x8] sm:$0xff] %v744
  %777 = vst [vmem:[%s3 + $0x10] sm:$0xff] %v745
  %778 = vst [vmem:[%s3 + $0x18] sm:$0xff] %v746
  %779 = vst [vmem:[%s3 + $0x20] sm:$0xff] %v747
  %780 = vst [vmem:[%s3 + $0x28] sm:$0xff] %v748
  %781 = vst [vmem:[%s3 + $0x30] sm:$0xff] %v749
  %782 = vst [vmem:[%s3 + $0x38] sm:$0xff] %v750
  %783 = vst [vmem:[%s3 + $0x40] sm:$0xff] %v751
  %784 = vst [vmem:[%s3 + $0x48] sm:$0xff] %v752
  %785 = vst [vmem:[%s3 + $0x50] sm:$0xff] %v753
  %786 = vst [vmem:[%s3 + $0x58] sm:$0xff] %v754
  %787 = vst [vmem:[%s3 + $0x60] sm:$0xff] %v755
  %788 = vst [vmem:[%s3 + $0x68] sm:$0xff] %v756
  %789 = vst [vmem:[%s3 + $0x70] sm:$0xff] %v757
  %790 = vst [vmem:[%s3 + $0x78] sm:$0xff] %v758
  %791 = vst [vmem:[%s3 + $0x80] sm:$0xf] %v759
  %792 = vst [vmem:[%s3 + $0x88] sm:$0xf] %v760
  %793 = vst [vmem:[%s3 + $0x90] sm:$0xf] %v761
  %794 = vst [vmem:[%s3 + $0x98] sm:$0xf] %v762
  %795 = vst [vmem:[%s3 + $0xa0] sm:$0xf] %v763
  %796 = vst [vmem:[%s3 + $0xa8] sm:$0xf] %v764
  %797 = vst [vmem:[%s3 + $0xb0] sm:$0xf] %v765
  %798 = vst [vmem:[%s3 + $0xb8] sm:$0xf] %v766
  %799 = vst [vmem:[%s3 + $0xc0] sm:$0xf] %v767
  %800 = vst [vmem:[%s3 + $0xc8] sm:$0xf] %v768
  %801 = vst [vmem:[%s3 + $0xd0] sm:$0xf] %v769
  %802 = vst [vmem:[%s3 + $0xd8] sm:$0xf] %v770
  %803 = vst [vmem:[%s3 + $0xe0] sm:$0xf] %v771
  %804 = vst [vmem:[%s3 + $0xe8] sm:$0xf] %v772
  %805 = vst [vmem:[%s3 + $0xf0] sm:$0xf] %v773
  %806 = vst [vmem:[%s3 + $0xf8] sm:$0xf] %v774
  // Predicated region
  $region14: #{generator_forward.7} parent=0 // pred_check
    _
  $region15: #{generator_forward.7} parent=0 // pred_check_branch
    %808 = sbr.rel (0) target = $region17
  $region16: #{generator_forward.7} parent=0 // pred_region
    _
  $region17: #{generator_forward.7} parent=0 // pred_fallthru
    _
  // Predicated region
  $region18: #{generator_forward.7} parent=0 // pred_check
    _
  $region19: #{generator_forward.7} parent=0 // pred_check_branch
    %810 = sbr.rel (0) target = $region21
  $region20: #{generator_forward.7} parent=0 // pred_region
    _
  $region21: #{generator_forward.7} parent=0 // pred_fallthru
    _

</llo_original>
